<compile_context>
chip_gen: v5e
topology: v5e:2x2
jax: 0.10.0
libtpu: 0.0.40
codegen_flags: <defaults>
</compile_context>

<pallas_src>
import functools

import jax
import jax.numpy as jnp
from jax import lax
from jax.experimental import pallas as pl
from jax.experimental.pallas import tpu as pltpu


def _bilstm_tagger_kernel(
    emb_ref,        # (T*B, 2H)   time-major rows: [emb(t) | emb(T-1-t)]
    wih_bd_ref,     # (2H, 8H)    block-diag input projection (gate-reordered)
    whh_bd_ref,     # (2H, 8H)    block-diag recurrent weights, bf16
    bias_ref,       # (1, 8H)     b_ih + b_hh, gate-reordered / interleaved
    bio_w_ref,      # (2H, BIOP)  bio classifier W^T, lane-padded
    bio_b_ref,      # (1, BIOP)
    rel_w_ref,      # (2H, RELP)  rel classifier W^T, lane-padded
    rel_b_ref,      # (1, RELP)
    bio_out_ref,    # (T*B, BIOP) output (time-major, flattened, lane-padded)
    rel_out_ref,    # (B, RELP)   output (lane-padded)
    lstm_out_ref,   # (T*B, 2H)   VMEM scratch
    *, T, B, H,
):
    H2, H4, H6, H8 = 2 * H, 4 * H, 6 * H, 8 * H

    # ---- hoisted input projection for BOTH directions, bias folded in ----
    # (T*B, 2H) @ (2H, 8H): the backward half is already time-reversed via the
    # emb layout, so the loop below reads one contiguous row block per step.
    gates_pre = (
        jnp.dot(emb_ref[...], wih_bd_ref[...],
                preferred_element_type=jnp.float32)
        + bias_ref[...]
    )

    whh_bd = whh_bd_ref[...]                       # bf16 (2H, 8H)

    h = jnp.zeros((B, H2), jnp.float32)            # [h_fwd | h_bwd]
    c = jnp.zeros((B, H2), jnp.float32)
    sum_h = jnp.zeros((B, H2), jnp.float32)

    # Fully-unrolled serial recurrence.  Per step, the dependency chain is:
    # one bf16 (B,2H)@(2H,8H) MXU push, one add, one sigmoid(B,6H),
    # two tanh(B,2H) and a few VPU muls.  Scratch stores and the mean-pool
    # running sum are off-chain filler.
    for t in range(T):
        rec = jnp.dot(h.astype(jnp.bfloat16), whh_bd,
                      preferred_element_type=jnp.float32)         # (B, 8H)
        g_all = gates_pre[t * B:(t + 1) * B, :] + rec             # (B, 8H)

        sg = jax.nn.sigmoid(g_all[:, 0:H6])    # [i_f,i_b | f_f,f_b | o_f,o_b]
        gg = jnp.tanh(g_all[:, H6:H8])         # [g_f, g_b]
        i_g = sg[:, 0:H2]
        f_g = sg[:, H2:H4]
        o_g = sg[:, H4:H6]

        c = f_g * c + i_g * gg
        h = o_g * jnp.tanh(c)

        # static-slice writes into the flat 2D scratch (off the chain):
        # forward half belongs to time t, backward half to time T-1-t.
        tb = T - 1 - t
        lstm_out_ref[t * B:(t + 1) * B, 0:H] = h[:, 0:H]
        lstm_out_ref[tb * B:(tb + 1) * B, H:H2] = h[:, H:H2]
        sum_h = sum_h + h

    # ---- per-token BIO classifier: one (T*B, 2H) @ (2H, BIOP) matmul ----
    bio_out_ref[...] = (
        jnp.dot(lstm_out_ref[...], bio_w_ref[...],
                preferred_element_type=jnp.float32)
        + bio_b_ref[...]
    )

    # ---- AvgPool1d over the sequence (running sum / T), then rel head ----
    pooled = sum_h * (1.0 / T)                                    # (B, 2H)
    rel_out_ref[...] = (
        jnp.dot(pooled, rel_w_ref[...],
                preferred_element_type=jnp.float32)
        + rel_b_ref[...]
    )


def prepare_kernel_params(params, lane_pad=128):
    """One-time packing of weights into the layouts the kernel consumes.

    Gate order is remapped from PyTorch's (i, f, g, o) to an interleaved
    [i_f, i_b, f_f, f_b, o_f, o_b, g_f, g_b] column layout so the kernel can
    apply one sigmoid over 6H lanes and one tanh over 2H lanes per step.
    Done outside the per-call jitted path.
    """
    H = params["w_ih_f"].shape[1]
    IFOG = (0, 1, 3, 2)   # PyTorch gate blocks (i,f,g,o) -> kernel order (i,f,o,g)

    def blockdiag(wf, wb, dtype):
        wfT, wbT = wf.T, wb.T                      # (H, 4H), cols [i|f|g|o]
        out = jnp.zeros((2 * H, 8 * H), jnp.float32)
        for k, g in enumerate(IFOG):
            out = out.at[0:H, (2 * k) * H:(2 * k + 1) * H].set(
                wfT[:, g * H:(g + 1) * H])
            out = out.at[H:2 * H, (2 * k + 1) * H:(2 * k + 2) * H].set(
                wbT[:, g * H:(g + 1) * H])
        return out.astype(dtype)

    def bias_interleave(bf, bb):
        parts = []
        for g in IFOG:
            parts.append(bf[g * H:(g + 1) * H])
            parts.append(bb[g * H:(g + 1) * H])
        return jnp.concatenate(parts)[None, :].astype(jnp.float32)

    bf = params["b_ih_f"] + params["b_hh_f"]
    bb = params["b_ih_b"] + params["b_hh_b"]

    bio_size = params["bio_w"].shape[0]
    rel_size = params["rel_w"].shape[0]
    bio_w = jnp.zeros((2 * H, lane_pad), jnp.float32).at[:, :bio_size].set(
        params["bio_w"].T.astype(jnp.float32))
    bio_b = jnp.zeros((1, lane_pad), jnp.float32).at[:, :bio_size].set(
        params["bio_b"].astype(jnp.float32))
    rel_w = jnp.zeros((2 * H, lane_pad), jnp.float32).at[:, :rel_size].set(
        params["rel_w"].T.astype(jnp.float32))
    rel_b = jnp.zeros((1, lane_pad), jnp.float32).at[:, :rel_size].set(
        params["rel_b"].astype(jnp.float32))

    return {
        # input projection stays f32 (hoisted, off the serial chain)
        "wih_bd": blockdiag(params["w_ih_f"], params["w_ih_b"], jnp.float32),
        # recurrent weights bf16: single MXU pass on the critical path
        "whh_bd": blockdiag(params["w_hh_f"], params["w_hh_b"], jnp.bfloat16),
        "bias": bias_interleave(bf, bb),
        "bio_w": bio_w, "bio_b": bio_b,
        "rel_w": rel_w, "rel_b": rel_b,
    }


def model_forward(tokens, emb_table, prepped, *, bio_size, rel_size):
    """tokens: (B, T) int32. Returns (rel_predict (B, rel), bio_predict (B, T, bio))."""
    B, T = tokens.shape
    H = emb_table.shape[1]
    H2 = 2 * H
    bio_pad = prepped["bio_w"].shape[1]
    rel_pad = prepped["rel_w"].shape[1]

    # glue: time-major embedding gather (padding_idx=0 row is already zero),
    # backward-direction inputs are the same rows time-reversed, concatenated
    # on the lane axis so the kernel reads ONE contiguous row block per step.
    emb_tm = emb_table[tokens.T].astype(jnp.float32)              # (T, B, H)
    emb_cat = jnp.concatenate(
        [emb_tm, emb_tm[::-1]], axis=-1).reshape(T * B, H2)       # (T*B, 2H)

    kernel_inputs = (
        emb_cat,
        prepped["wih_bd"], prepped["whh_bd"], prepped["bias"],
        prepped["bio_w"], prepped["bio_b"],
        prepped["rel_w"], prepped["rel_b"],
    )

    vmem_spec = pl.BlockSpec(memory_space=pltpu.MemorySpace.VMEM)

    bio_flat, rel_padded = pl.pallas_call(
        functools.partial(_bilstm_tagger_kernel, T=T, B=B, H=H),
        out_shape=(
            jax.ShapeDtypeStruct((T * B, bio_pad), jnp.float32),
            jax.ShapeDtypeStruct((B, rel_pad), jnp.float32),
        ),
        in_specs=[vmem_spec] * len(kernel_inputs),
        out_specs=(vmem_spec, vmem_spec),
        scratch_shapes=[pltpu.VMEM((T * B, H2), jnp.float32)],
    )(*kernel_inputs)

    bio = jnp.transpose(bio_flat.reshape(T, B, bio_pad), (1, 0, 2))[:, :, :bio_size]
    rel = rel_padded[:, :rel_size]
    return rel, bio


# ---------------- pure-JAX reference (for correctness check) ----------------
def reference_forward(tokens, emb_table, params):
    emb = emb_table[tokens].astype(jnp.float32)                   # (B, T, H)
    B, T, H = emb.shape
    x_tm = jnp.transpose(emb, (1, 0, 2))                          # (T, B, H)

    def make_cell(wih, whh, b):
        def cell(carry, x_t):
            h, c = carry
            gates = x_t @ wih.T + h @ whh.T + b
            i, f, g, o = jnp.split(gates, 4, axis=-1)
            c = jax.nn.sigmoid(f) * c + jax.nn.sigmoid(i) * jnp.tanh(g)
            h = jax.nn.sigmoid(o) * jnp.tanh(c)
            return (h, c), h
        return cell

    init = (jnp.zeros((B, H), jnp.float32), jnp.zeros((B, H), jnp.float32))
    _, hs_f = lax.scan(make_cell(params["w_ih_f"], params["w_hh_f"],
                                 params["b_ih_f"] + params["b_hh_f"]), init, x_tm)
    _, hs_b = lax.scan(make_cell(params["w_ih_b"], params["w_hh_b"],
                                 params["b_ih_b"] + params["b_hh_b"]), init, x_tm[::-1])
    hs_b = hs_b[::-1]
    out = jnp.concatenate([hs_f, hs_b], axis=-1)                  # (T, B, 2H)
    out_btd = jnp.transpose(out, (1, 0, 2))                       # (B, T, 2H)
    bio = out_btd @ params["bio_w"].T + params["bio_b"]
    pooled = out_btd.mean(axis=1)
    rel = pooled @ params["rel_w"].T + params["rel_b"]
    return rel, bio


if __name__ == "__main__":
    # config (small, consistent with the module's __init__)
    hidden_size = 32
    vocab_size = 100          # embedding has vocab_size + 1 rows
    max_length = 8
    bio_size = 8
    rel_size = 4
    batch = 2

    key = jax.random.PRNGKey(0)
    ks = jax.random.split(key, 16)
    scale = 0.1

    emb_table = scale * jax.random.normal(ks[0], (vocab_size + 1, hidden_size), jnp.float32)
    emb_table = emb_table.at[0].set(0.0)              # padding_idx=0

    H = hidden_size
    params = {
        "w_ih_f": scale * jax.random.normal(ks[1], (4 * H, H), jnp.float32),
        "w_hh_f": scale * jax.random.normal(ks[2], (4 * H, H), jnp.float32),
        "b_ih_f": scale * jax.random.normal(ks[3], (4 * H,), jnp.float32),
        "b_hh_f": scale * jax.random.normal(ks[4], (4 * H,), jnp.float32),
        "w_ih_b": scale * jax.random.normal(ks[5], (4 * H, H), jnp.float32),
        "w_hh_b": scale * jax.random.normal(ks[6], (4 * H, H), jnp.float32),
        "b_ih_b": scale * jax.random.normal(ks[7], (4 * H,), jnp.float32),
        "b_hh_b": scale * jax.random.normal(ks[8], (4 * H,), jnp.float32),
        "bio_w": scale * jax.random.normal(ks[9], (bio_size, 2 * H), jnp.float32),
        "bio_b": scale * jax.random.normal(ks[10], (bio_size,), jnp.float32),
        "rel_w": scale * jax.random.normal(ks[11], (rel_size, 2 * H), jnp.float32),
        "rel_b": scale * jax.random.normal(ks[12], (rel_size,), jnp.float32),
    }

    tokens = jax.random.randint(ks[13], (batch, max_length), 0, vocab_size + 1, jnp.int32)

    # one-time weight packing (outside the per-call jitted path)
    prepped = jax.block_until_ready(prepare_kernel_params(params))

    fwd = jax.jit(model_forward, static_argnames=("bio_size", "rel_size"))
    rel_pred, bio_pred = fwd(tokens, emb_table, prepped,
                             bio_size=bio_size, rel_size=rel_size)
    jax.block_until_ready((rel_pred, bio_pred))

    rel_ref, bio_ref = reference_forward(tokens, emb_table, params)
    assert rel_pred.shape == (batch, rel_size)
    assert bio_pred.shape == (batch, max_length, bio_size)
    # tolerance relaxed vs. pure-f32 because the recurrent matmul operands are
    # bf16 (f32 accumulation); observed error at these scales is <<1e-2.
    assert jnp.allclose(rel_pred, rel_ref, rtol=2e-2, atol=2e-2)
    assert jnp.allclose(bio_pred, bio_ref, rtol=2e-2, atol=2e-2)

    print("KERNEL_OK")
</pallas_src>

<mosaic_0001>
module attributes {stable_mosaic.version = 11 : i64} {
  func.func @_bilstm_tagger_kernel(%arg0: memref<16x64xf32, #tpu.memory_space<vmem>>, %arg1: memref<64x256xf32, #tpu.memory_space<vmem>>, %arg2: memref<64x256xbf16, #tpu.memory_space<vmem>>, %arg3: memref<1x256xf32, #tpu.memory_space<vmem>>, %arg4: memref<64x128xf32, #tpu.memory_space<vmem>>, %arg5: memref<1x128xf32, #tpu.memory_space<vmem>>, %arg6: memref<64x128xf32, #tpu.memory_space<vmem>>, %arg7: memref<1x128xf32, #tpu.memory_space<vmem>>, %arg8: memref<16x128xf32, #tpu.memory_space<vmem>>, %arg9: memref<2x128xf32, #tpu.memory_space<vmem>>, %arg10: memref<16x64xf32, #tpu.memory_space<vmem>>) attributes {dimension_semantics = [], scalar_prefetch = 0 : i64, scratch_operands = 1 : i64, tpu.core_type = #tpu.core_type<tc>} {
    %c0 = arith.constant 0 : index
    %c0_0 = arith.constant 0 : index
    %0 = vector.load %arg0[%c0, %c0_0] : memref<16x64xf32, #tpu.memory_space<vmem>>, vector<16x64xf32>
    %c0_1 = arith.constant 0 : index
    %c0_2 = arith.constant 0 : index
    %1 = vector.load %arg1[%c0_1, %c0_2] : memref<64x256xf32, #tpu.memory_space<vmem>>, vector<64x256xf32>
    %cst = arith.constant dense<0.000000e+00> : vector<16x256xf32>
    %2 = tpu.matmul %0, %1, %cst {dimension_numbers = #tpu.dot_dimension_numbers<[1], [0], [0], [1], [0, 0, 1, 1], [], []>} : vector<16x64xf32>, vector<64x256xf32>, vector<16x256xf32> -> vector<16x256xf32>
    %c0_3 = arith.constant 0 : index
    %c0_4 = arith.constant 0 : index
    %3 = vector.load %arg3[%c0_3, %c0_4] : memref<1x256xf32, #tpu.memory_space<vmem>>, vector<1x256xf32>
    %4 = vector.broadcast %3 : vector<1x256xf32> to vector<16x256xf32>
    %5 = arith.addf %2, %4 : vector<16x256xf32>
    %c0_5 = arith.constant 0 : index
    %c0_6 = arith.constant 0 : index
    %6 = vector.load %arg2[%c0_5, %c0_6] : memref<64x256xbf16, #tpu.memory_space<vmem>>, vector<64x256xbf16>
    %cst_7 = arith.constant 0.000000e+00 : f32
    %7 = vector.broadcast %cst_7 : f32 to vector<2x64xf32>
    %cst_8 = arith.constant 0.000000e+00 : f32
    %8 = vector.broadcast %cst_8 : f32 to vector<2x64xf32>
    %cst_9 = arith.constant 0.000000e+00 : f32
    %9 = vector.broadcast %cst_9 : f32 to vector<2x64xf32>
    %10 = arith.truncf %7 : vector<2x64xf32> to vector<2x64xbf16>
    %cst_10 = arith.constant dense<0.000000e+00> : vector<2x256xf32>
    %11 = tpu.matmul %10, %6, %cst_10 {dimension_numbers = #tpu.dot_dimension_numbers<[1], [0], [0], [1], [0, 0, 1, 1], [], []>} : vector<2x64xbf16>, vector<64x256xbf16>, vector<2x256xf32> -> vector<2x256xf32>
    %12 = vector.extract_strided_slice %5 {offsets = [0, 0], sizes = [2, 256], strides = [1, 1]} : vector<16x256xf32> to vector<2x256xf32>
    %13 = arith.addf %12, %11 : vector<2x256xf32>
    %14 = vector.extract_strided_slice %13 {offsets = [0, 0], sizes = [2, 192], strides = [1, 1]} : vector<2x256xf32> to vector<2x192xf32>
    %15 = arith.negf %14 : vector<2x192xf32>
    %16 = math.exp %15 : vector<2x192xf32>
    %cst_11 = arith.constant 1.000000e+00 : f32
    %17 = vector.broadcast %cst_11 : f32 to vector<2x192xf32>
    %18 = arith.addf %17, %16 : vector<2x192xf32>
    %19 = arith.divf %17, %18 : vector<2x192xf32>
    %20 = vector.extract_strided_slice %13 {offsets = [0, 192], sizes = [2, 64], strides = [1, 1]} : vector<2x256xf32> to vector<2x64xf32>
    %21 = math.tanh %20 : vector<2x64xf32>
    %22 = vector.extract_strided_slice %19 {offsets = [0, 0], sizes = [2, 64], strides = [1, 1]} : vector<2x192xf32> to vector<2x64xf32>
    %23 = vector.extract_strided_slice %19 {offsets = [0, 64], sizes = [2, 64], strides = [1, 1]} : vector<2x192xf32> to vector<2x64xf32>
    %24 = vector.extract_strided_slice %19 {offsets = [0, 128], sizes = [2, 64], strides = [1, 1]} : vector<2x192xf32> to vector<2x64xf32>
    %25 = arith.mulf %23, %8 : vector<2x64xf32>
    %26 = arith.mulf %22, %21 : vector<2x64xf32>
    %27 = arith.addf %25, %26 : vector<2x64xf32>
    %28 = math.tanh %27 : vector<2x64xf32>
    %29 = arith.mulf %24, %28 : vector<2x64xf32>
    %30 = vector.extract_strided_slice %29 {offsets = [0, 0], sizes = [2, 32], strides = [1, 1]} : vector<2x64xf32> to vector<2x32xf32>
    %c0_12 = arith.constant 0 : index
    %c0_13 = arith.constant 0 : index
    %31 = vector.load %arg10[%c0_12, %c0_13] : memref<16x64xf32, #tpu.memory_space<vmem>>, vector<2x32xf32>
    tpu.vector_store %arg10[%c0_12, %c0_13], %30 {strides = array<i32>} : memref<16x64xf32, #tpu.memory_space<vmem>>, vector<2x32xf32>,
    %32 = vector.extract_strided_slice %29 {offsets = [0, 32], sizes = [2, 32], strides = [1, 1]} : vector<2x64xf32> to vector<2x32xf32>
    %c14 = arith.constant 14 : index
    %c32 = arith.constant 32 : index
    %33 = vector.load %arg10[%c14, %c32] : memref<16x64xf32, #tpu.memory_space<vmem>>, vector<2x32xf32>
    tpu.vector_store %arg10[%c14, %c32], %32 {strides = array<i32>} : memref<16x64xf32, #tpu.memory_space<vmem>>, vector<2x32xf32>,
    %34 = arith.addf %9, %29 : vector<2x64xf32>
    %35 = arith.truncf %29 : vector<2x64xf32> to vector<2x64xbf16>
    %cst_14 = arith.constant dense<0.000000e+00> : vector<2x256xf32>
    %36 = tpu.matmul %35, %6, %cst_14 {dimension_numbers = #tpu.dot_dimension_numbers<[1], [0], [0], [1], [0, 0, 1, 1], [], []>} : vector<2x64xbf16>, vector<64x256xbf16>, vector<2x256xf32> -> vector<2x256xf32>
    %37 = vector.extract_strided_slice %5 {offsets = [2, 0], sizes = [2, 256], strides = [1, 1]} : vector<16x256xf32> to vector<2x256xf32>
    %38 = arith.addf %37, %36 : vector<2x256xf32>
    %39 = vector.extract_strided_slice %38 {offsets = [0, 0], sizes = [2, 192], strides = [1, 1]} : vector<2x256xf32> to vector<2x192xf32>
    %40 = arith.negf %39 : vector<2x192xf32>
    %41 = math.exp %40 : vector<2x192xf32>
    %cst_15 = arith.constant 1.000000e+00 : f32
    %42 = vector.broadcast %cst_15 : f32 to vector<2x192xf32>
    %43 = arith.addf %42, %41 : vector<2x192xf32>
    %44 = arith.divf %42, %43 : vector<2x192xf32>
    %45 = vector.extract_strided_slice %38 {offsets = [0, 192], sizes = [2, 64], strides = [1, 1]} : vector<2x256xf32> to vector<2x64xf32>
    %46 = math.tanh %45 : vector<2x64xf32>
    %47 = vector.extract_strided_slice %44 {offsets = [0, 0], sizes = [2, 64], strides = [1, 1]} : vector<2x192xf32> to vector<2x64xf32>
    %48 = vector.extract_strided_slice %44 {offsets = [0, 64], sizes = [2, 64], strides = [1, 1]} : vector<2x192xf32> to vector<2x64xf32>
    %49 = vector.extract_strided_slice %44 {offsets = [0, 128], sizes = [2, 64], strides = [1, 1]} : vector<2x192xf32> to vector<2x64xf32>
    %50 = arith.mulf %48, %27 : vector<2x64xf32>
    %51 = arith.mulf %47, %46 : vector<2x64xf32>
    %52 = arith.addf %50, %51 : vector<2x64xf32>
    %53 = math.tanh %52 : vector<2x64xf32>
    %54 = arith.mulf %49, %53 : vector<2x64xf32>
    %55 = vector.extract_strided_slice %54 {offsets = [0, 0], sizes = [2, 32], strides = [1, 1]} : vector<2x64xf32> to vector<2x32xf32>
    %c2 = arith.constant 2 : index
    %c0_16 = arith.constant 0 : index
    %56 = vector.load %arg10[%c2, %c0_16] : memref<16x64xf32, #tpu.memory_space<vmem>>, vector<2x32xf32>
    tpu.vector_store %arg10[%c2, %c0_16], %55 {strides = array<i32>} : memref<16x64xf32, #tpu.memory_space<vmem>>, vector<2x32xf32>,
    %57 = vector.extract_strided_slice %54 {offsets = [0, 32], sizes = [2, 32], strides = [1, 1]} : vector<2x64xf32> to vector<2x32xf32>
    %c12 = arith.constant 12 : index
    %c32_17 = arith.constant 32 : index
    %58 = vector.load %arg10[%c12, %c32_17] : memref<16x64xf32, #tpu.memory_space<vmem>>, vector<2x32xf32>
    tpu.vector_store %arg10[%c12, %c32_17], %57 {strides = array<i32>} : memref<16x64xf32, #tpu.memory_space<vmem>>, vector<2x32xf32>,
    %59 = arith.addf %34, %54 : vector<2x64xf32>
    %60 = arith.truncf %54 : vector<2x64xf32> to vector<2x64xbf16>
    %cst_18 = arith.constant dense<0.000000e+00> : vector<2x256xf32>
    %61 = tpu.matmul %60, %6, %cst_18 {dimension_numbers = #tpu.dot_dimension_numbers<[1], [0], [0], [1], [0, 0, 1, 1], [], []>} : vector<2x64xbf16>, vector<64x256xbf16>, vector<2x256xf32> -> vector<2x256xf32>
    %62 = vector.extract_strided_slice %5 {offsets = [4, 0], sizes = [2, 256], strides = [1, 1]} : vector<16x256xf32> to vector<2x256xf32>
    %63 = arith.addf %62, %61 : vector<2x256xf32>
    %64 = vector.extract_strided_slice %63 {offsets = [0, 0], sizes = [2, 192], strides = [1, 1]} : vector<2x256xf32> to vector<2x192xf32>
    %65 = arith.negf %64 : vector<2x192xf32>
    %66 = math.exp %65 : vector<2x192xf32>
    %cst_19 = arith.constant 1.000000e+00 : f32
    %67 = vector.broadcast %cst_19 : f32 to vector<2x192xf32>
    %68 = arith.addf %67, %66 : vector<2x192xf32>
    %69 = arith.divf %67, %68 : vector<2x192xf32>
    %70 = vector.extract_strided_slice %63 {offsets = [0, 192], sizes = [2, 64], strides = [1, 1]} : vector<2x256xf32> to vector<2x64xf32>
    %71 = math.tanh %70 : vector<2x64xf32>
    %72 = vector.extract_strided_slice %69 {offsets = [0, 0], sizes = [2, 64], strides = [1, 1]} : vector<2x192xf32> to vector<2x64xf32>
    %73 = vector.extract_strided_slice %69 {offsets = [0, 64], sizes = [2, 64], strides = [1, 1]} : vector<2x192xf32> to vector<2x64xf32>
    %74 = vector.extract_strided_slice %69 {offsets = [0, 128], sizes = [2, 64], strides = [1, 1]} : vector<2x192xf32> to vector<2x64xf32>
    %75 = arith.mulf %73, %52 : vector<2x64xf32>
    %76 = arith.mulf %72, %71 : vector<2x64xf32>
    %77 = arith.addf %75, %76 : vector<2x64xf32>
    %78 = math.tanh %77 : vector<2x64xf32>
    %79 = arith.mulf %74, %78 : vector<2x64xf32>
    %80 = vector.extract_strided_slice %79 {offsets = [0, 0], sizes = [2, 32], strides = [1, 1]} : vector<2x64xf32> to vector<2x32xf32>
    %c4 = arith.constant 4 : index
    %c0_20 = arith.constant 0 : index
    %81 = vector.load %arg10[%c4, %c0_20] : memref<16x64xf32, #tpu.memory_space<vmem>>, vector<2x32xf32>
    tpu.vector_store %arg10[%c4, %c0_20], %80 {strides = array<i32>} : memref<16x64xf32, #tpu.memory_space<vmem>>, vector<2x32xf32>,
    %82 = vector.extract_strided_slice %79 {offsets = [0, 32], sizes = [2, 32], strides = [1, 1]} : vector<2x64xf32> to vector<2x32xf32>
    %c10 = arith.constant 10 : index
    %c32_21 = arith.constant 32 : index
    %83 = vector.load %arg10[%c10, %c32_21] : memref<16x64xf32, #tpu.memory_space<vmem>>, vector<2x32xf32>
    tpu.vector_store %arg10[%c10, %c32_21], %82 {strides = array<i32>} : memref<16x64xf32, #tpu.memory_space<vmem>>, vector<2x32xf32>,
    %84 = arith.addf %59, %79 : vector<2x64xf32>
    %85 = arith.truncf %79 : vector<2x64xf32> to vector<2x64xbf16>
    %cst_22 = arith.constant dense<0.000000e+00> : vector<2x256xf32>
    %86 = tpu.matmul %85, %6, %cst_22 {dimension_numbers = #tpu.dot_dimension_numbers<[1], [0], [0], [1], [0, 0, 1, 1], [], []>} : vector<2x64xbf16>, vector<64x256xbf16>, vector<2x256xf32> -> vector<2x256xf32>
    %87 = vector.extract_strided_slice %5 {offsets = [6, 0], sizes = [2, 256], strides = [1, 1]} : vector<16x256xf32> to vector<2x256xf32>
    %88 = arith.addf %87, %86 : vector<2x256xf32>
    %89 = vector.extract_strided_slice %88 {offsets = [0, 0], sizes = [2, 192], strides = [1, 1]} : vector<2x256xf32> to vector<2x192xf32>
    %90 = arith.negf %89 : vector<2x192xf32>
    %91 = math.exp %90 : vector<2x192xf32>
    %cst_23 = arith.constant 1.000000e+00 : f32
    %92 = vector.broadcast %cst_23 : f32 to vector<2x192xf32>
    %93 = arith.addf %92, %91 : vector<2x192xf32>
    %94 = arith.divf %92, %93 : vector<2x192xf32>
    %95 = vector.extract_strided_slice %88 {offsets = [0, 192], sizes = [2, 64], strides = [1, 1]} : vector<2x256xf32> to vector<2x64xf32>
    %96 = math.tanh %95 : vector<2x64xf32>
    %97 = vector.extract_strided_slice %94 {offsets = [0, 0], sizes = [2, 64], strides = [1, 1]} : vector<2x192xf32> to vector<2x64xf32>
    %98 = vector.extract_strided_slice %94 {offsets = [0, 64], sizes = [2, 64], strides = [1, 1]} : vector<2x192xf32> to vector<2x64xf32>
    %99 = vector.extract_strided_slice %94 {offsets = [0, 128], sizes = [2, 64], strides = [1, 1]} : vector<2x192xf32> to vector<2x64xf32>
    %100 = arith.mulf %98, %77 : vector<2x64xf32>
    %101 = arith.mulf %97, %96 : vector<2x64xf32>
    %102 = arith.addf %100, %101 : vector<2x64xf32>
    %103 = math.tanh %102 : vector<2x64xf32>
    %104 = arith.mulf %99, %103 : vector<2x64xf32>
    %105 = vector.extract_strided_slice %104 {offsets = [0, 0], sizes = [2, 32], strides = [1, 1]} : vector<2x64xf32> to vector<2x32xf32>
    %c6 = arith.constant 6 : index
    %c0_24 = arith.constant 0 : index
    %106 = vector.load %arg10[%c6, %c0_24] : memref<16x64xf32, #tpu.memory_space<vmem>>, vector<2x32xf32>
    tpu.vector_store %arg10[%c6, %c0_24], %105 {strides = array<i32>} : memref<16x64xf32, #tpu.memory_space<vmem>>, vector<2x32xf32>,
    %107 = vector.extract_strided_slice %104 {offsets = [0, 32], sizes = [2, 32], strides = [1, 1]} : vector<2x64xf32> to vector<2x32xf32>
    %c8 = arith.constant 8 : index
    %c32_25 = arith.constant 32 : index
    %108 = vector.load %arg10[%c8, %c32_25] : memref<16x64xf32, #tpu.memory_space<vmem>>, vector<2x32xf32>
    tpu.vector_store %arg10[%c8, %c32_25], %107 {strides = array<i32>} : memref<16x64xf32, #tpu.memory_space<vmem>>, vector<2x32xf32>,
    %109 = arith.addf %84, %104 : vector<2x64xf32>
    %110 = arith.truncf %104 : vector<2x64xf32> to vector<2x64xbf16>
    %cst_26 = arith.constant dense<0.000000e+00> : vector<2x256xf32>
    %111 = tpu.matmul %110, %6, %cst_26 {dimension_numbers = #tpu.dot_dimension_numbers<[1], [0], [0], [1], [0, 0, 1, 1], [], []>} : vector<2x64xbf16>, vector<64x256xbf16>, vector<2x256xf32> -> vector<2x256xf32>
    %112 = vector.extract_strided_slice %5 {offsets = [8, 0], sizes = [2, 256], strides = [1, 1]} : vector<16x256xf32> to vector<2x256xf32>
    %113 = arith.addf %112, %111 : vector<2x256xf32>
    %114 = vector.extract_strided_slice %113 {offsets = [0, 0], sizes = [2, 192], strides = [1, 1]} : vector<2x256xf32> to vector<2x192xf32>
    %115 = arith.negf %114 : vector<2x192xf32>
    %116 = math.exp %115 : vector<2x192xf32>
    %cst_27 = arith.constant 1.000000e+00 : f32
    %117 = vector.broadcast %cst_27 : f32 to vector<2x192xf32>
    %118 = arith.addf %117, %116 : vector<2x192xf32>
    %119 = arith.divf %117, %118 : vector<2x192xf32>
    %120 = vector.extract_strided_slice %113 {offsets = [0, 192], sizes = [2, 64], strides = [1, 1]} : vector<2x256xf32> to vector<2x64xf32>
    %121 = math.tanh %120 : vector<2x64xf32>
    %122 = vector.extract_strided_slice %119 {offsets = [0, 0], sizes = [2, 64], strides = [1, 1]} : vector<2x192xf32> to vector<2x64xf32>
    %123 = vector.extract_strided_slice %119 {offsets = [0, 64], sizes = [2, 64], strides = [1, 1]} : vector<2x192xf32> to vector<2x64xf32>
    %124 = vector.extract_strided_slice %119 {offsets = [0, 128], sizes = [2, 64], strides = [1, 1]} : vector<2x192xf32> to vector<2x64xf32>
    %125 = arith.mulf %123, %102 : vector<2x64xf32>
    %126 = arith.mulf %122, %121 : vector<2x64xf32>
    %127 = arith.addf %125, %126 : vector<2x64xf32>
    %128 = math.tanh %127 : vector<2x64xf32>
    %129 = arith.mulf %124, %128 : vector<2x64xf32>
    %130 = vector.extract_strided_slice %129 {offsets = [0, 0], sizes = [2, 32], strides = [1, 1]} : vector<2x64xf32> to vector<2x32xf32>
    %c8_28 = arith.constant 8 : index
    %c0_29 = arith.constant 0 : index
    %131 = vector.load %arg10[%c8_28, %c0_29] : memref<16x64xf32, #tpu.memory_space<vmem>>, vector<2x32xf32>
    tpu.vector_store %arg10[%c8_28, %c0_29], %130 {strides = array<i32>} : memref<16x64xf32, #tpu.memory_space<vmem>>, vector<2x32xf32>,
    %132 = vector.extract_strided_slice %129 {offsets = [0, 32], sizes = [2, 32], strides = [1, 1]} : vector<2x64xf32> to vector<2x32xf32>
    %c6_30 = arith.constant 6 : index
    %c32_31 = arith.constant 32 : index
    %133 = vector.load %arg10[%c6_30, %c32_31] : memref<16x64xf32, #tpu.memory_space<vmem>>, vector<2x32xf32>
    tpu.vector_store %arg10[%c6_30, %c32_31], %132 {strides = array<i32>} : memref<16x64xf32, #tpu.memory_space<vmem>>, vector<2x32xf32>,
    %134 = arith.addf %109, %129 : vector<2x64xf32>
    %135 = arith.truncf %129 : vector<2x64xf32> to vector<2x64xbf16>
    %cst_32 = arith.constant dense<0.000000e+00> : vector<2x256xf32>
    %136 = tpu.matmul %135, %6, %cst_32 {dimension_numbers = #tpu.dot_dimension_numbers<[1], [0], [0], [1], [0, 0, 1, 1], [], []>} : vector<2x64xbf16>, vector<64x256xbf16>, vector<2x256xf32> -> vector<2x256xf32>
    %137 = vector.extract_strided_slice %5 {offsets = [10, 0], sizes = [2, 256], strides = [1, 1]} : vector<16x256xf32> to vector<2x256xf32>
    %138 = arith.addf %137, %136 : vector<2x256xf32>
    %139 = vector.extract_strided_slice %138 {offsets = [0, 0], sizes = [2, 192], strides = [1, 1]} : vector<2x256xf32> to vector<2x192xf32>
    %140 = arith.negf %139 : vector<2x192xf32>
    %141 = math.exp %140 : vector<2x192xf32>
    %cst_33 = arith.constant 1.000000e+00 : f32
    %142 = vector.broadcast %cst_33 : f32 to vector<2x192xf32>
    %143 = arith.addf %142, %141 : vector<2x192xf32>
    %144 = arith.divf %142, %143 : vector<2x192xf32>
    %145 = vector.extract_strided_slice %138 {offsets = [0, 192], sizes = [2, 64], strides = [1, 1]} : vector<2x256xf32> to vector<2x64xf32>
    %146 = math.tanh %145 : vector<2x64xf32>
    %147 = vector.extract_strided_slice %144 {offsets = [0, 0], sizes = [2, 64], strides = [1, 1]} : vector<2x192xf32> to vector<2x64xf32>
    %148 = vector.extract_strided_slice %144 {offsets = [0, 64], sizes = [2, 64], strides = [1, 1]} : vector<2x192xf32> to vector<2x64xf32>
    %149 = vector.extract_strided_slice %144 {offsets = [0, 128], sizes = [2, 64], strides = [1, 1]} : vector<2x192xf32> to vector<2x64xf32>
    %150 = arith.mulf %148, %127 : vector<2x64xf32>
    %151 = arith.mulf %147, %146 : vector<2x64xf32>
    %152 = arith.addf %150, %151 : vector<2x64xf32>
    %153 = math.tanh %152 : vector<2x64xf32>
    %154 = arith.mulf %149, %153 : vector<2x64xf32>
    %155 = vector.extract_strided_slice %154 {offsets = [0, 0], sizes = [2, 32], strides = [1, 1]} : vector<2x64xf32> to vector<2x32xf32>
    %c10_34 = arith.constant 10 : index
    %c0_35 = arith.constant 0 : index
    %156 = vector.load %arg10[%c10_34, %c0_35] : memref<16x64xf32, #tpu.memory_space<vmem>>, vector<2x32xf32>
    tpu.vector_store %arg10[%c10_34, %c0_35], %155 {strides = array<i32>} : memref<16x64xf32, #tpu.memory_space<vmem>>, vector<2x32xf32>,
    %157 = vector.extract_strided_slice %154 {offsets = [0, 32], sizes = [2, 32], strides = [1, 1]} : vector<2x64xf32> to vector<2x32xf32>
    %c4_36 = arith.constant 4 : index
    %c32_37 = arith.constant 32 : index
    %158 = vector.load %arg10[%c4_36, %c32_37] : memref<16x64xf32, #tpu.memory_space<vmem>>, vector<2x32xf32>
    tpu.vector_store %arg10[%c4_36, %c32_37], %157 {strides = array<i32>} : memref<16x64xf32, #tpu.memory_space<vmem>>, vector<2x32xf32>,
    %159 = arith.addf %134, %154 : vector<2x64xf32>
    %160 = arith.truncf %154 : vector<2x64xf32> to vector<2x64xbf16>
    %cst_38 = arith.constant dense<0.000000e+00> : vector<2x256xf32>
    %161 = tpu.matmul %160, %6, %cst_38 {dimension_numbers = #tpu.dot_dimension_numbers<[1], [0], [0], [1], [0, 0, 1, 1], [], []>} : vector<2x64xbf16>, vector<64x256xbf16>, vector<2x256xf32> -> vector<2x256xf32>
    %162 = vector.extract_strided_slice %5 {offsets = [12, 0], sizes = [2, 256], strides = [1, 1]} : vector<16x256xf32> to vector<2x256xf32>
    %163 = arith.addf %162, %161 : vector<2x256xf32>
    %164 = vector.extract_strided_slice %163 {offsets = [0, 0], sizes = [2, 192], strides = [1, 1]} : vector<2x256xf32> to vector<2x192xf32>
    %165 = arith.negf %164 : vector<2x192xf32>
    %166 = math.exp %165 : vector<2x192xf32>
    %cst_39 = arith.constant 1.000000e+00 : f32
    %167 = vector.broadcast %cst_39 : f32 to vector<2x192xf32>
    %168 = arith.addf %167, %166 : vector<2x192xf32>
    %169 = arith.divf %167, %168 : vector<2x192xf32>
    %170 = vector.extract_strided_slice %163 {offsets = [0, 192], sizes = [2, 64], strides = [1, 1]} : vector<2x256xf32> to vector<2x64xf32>
    %171 = math.tanh %170 : vector<2x64xf32>
    %172 = vector.extract_strided_slice %169 {offsets = [0, 0], sizes = [2, 64], strides = [1, 1]} : vector<2x192xf32> to vector<2x64xf32>
    %173 = vector.extract_strided_slice %169 {offsets = [0, 64], sizes = [2, 64], strides = [1, 1]} : vector<2x192xf32> to vector<2x64xf32>
    %174 = vector.extract_strided_slice %169 {offsets = [0, 128], sizes = [2, 64], strides = [1, 1]} : vector<2x192xf32> to vector<2x64xf32>
    %175 = arith.mulf %173, %152 : vector<2x64xf32>
    %176 = arith.mulf %172, %171 : vector<2x64xf32>
    %177 = arith.addf %175, %176 : vector<2x64xf32>
    %178 = math.tanh %177 : vector<2x64xf32>
    %179 = arith.mulf %174, %178 : vector<2x64xf32>
    %180 = vector.extract_strided_slice %179 {offsets = [0, 0], sizes = [2, 32], strides = [1, 1]} : vector<2x64xf32> to vector<2x32xf32>
    %c12_40 = arith.constant 12 : index
    %c0_41 = arith.constant 0 : index
    %181 = vector.load %arg10[%c12_40, %c0_41] : memref<16x64xf32, #tpu.memory_space<vmem>>, vector<2x32xf32>
    tpu.vector_store %arg10[%c12_40, %c0_41], %180 {strides = array<i32>} : memref<16x64xf32, #tpu.memory_space<vmem>>, vector<2x32xf32>,
    %182 = vector.extract_strided_slice %179 {offsets = [0, 32], sizes = [2, 32], strides = [1, 1]} : vector<2x64xf32> to vector<2x32xf32>
    %c2_42 = arith.constant 2 : index
    %c32_43 = arith.constant 32 : index
    %183 = vector.load %arg10[%c2_42, %c32_43] : memref<16x64xf32, #tpu.memory_space<vmem>>, vector<2x32xf32>
    tpu.vector_store %arg10[%c2_42, %c32_43], %182 {strides = array<i32>} : memref<16x64xf32, #tpu.memory_space<vmem>>, vector<2x32xf32>,
    %184 = arith.addf %159, %179 : vector<2x64xf32>
    %185 = arith.truncf %179 : vector<2x64xf32> to vector<2x64xbf16>
    %cst_44 = arith.constant dense<0.000000e+00> : vector<2x256xf32>
    %186 = tpu.matmul %185, %6, %cst_44 {dimension_numbers = #tpu.dot_dimension_numbers<[1], [0], [0], [1], [0, 0, 1, 1], [], []>} : vector<2x64xbf16>, vector<64x256xbf16>, vector<2x256xf32> -> vector<2x256xf32>
    %187 = vector.extract_strided_slice %5 {offsets = [14, 0], sizes = [2, 256], strides = [1, 1]} : vector<16x256xf32> to vector<2x256xf32>
    %188 = arith.addf %187, %186 : vector<2x256xf32>
    %189 = vector.extract_strided_slice %188 {offsets = [0, 0], sizes = [2, 192], strides = [1, 1]} : vector<2x256xf32> to vector<2x192xf32>
    %190 = arith.negf %189 : vector<2x192xf32>
    %191 = math.exp %190 : vector<2x192xf32>
    %cst_45 = arith.constant 1.000000e+00 : f32
    %192 = vector.broadcast %cst_45 : f32 to vector<2x192xf32>
    %193 = arith.addf %192, %191 : vector<2x192xf32>
    %194 = arith.divf %192, %193 : vector<2x192xf32>
    %195 = vector.extract_strided_slice %188 {offsets = [0, 192], sizes = [2, 64], strides = [1, 1]} : vector<2x256xf32> to vector<2x64xf32>
    %196 = math.tanh %195 : vector<2x64xf32>
    %197 = vector.extract_strided_slice %194 {offsets = [0, 0], sizes = [2, 64], strides = [1, 1]} : vector<2x192xf32> to vector<2x64xf32>
    %198 = vector.extract_strided_slice %194 {offsets = [0, 64], sizes = [2, 64], strides = [1, 1]} : vector<2x192xf32> to vector<2x64xf32>
    %199 = vector.extract_strided_slice %194 {offsets = [0, 128], sizes = [2, 64], strides = [1, 1]} : vector<2x192xf32> to vector<2x64xf32>
    %200 = arith.mulf %198, %177 : vector<2x64xf32>
    %201 = arith.mulf %197, %196 : vector<2x64xf32>
    %202 = arith.addf %200, %201 : vector<2x64xf32>
    %203 = math.tanh %202 : vector<2x64xf32>
    %204 = arith.mulf %199, %203 : vector<2x64xf32>
    %205 = vector.extract_strided_slice %204 {offsets = [0, 0], sizes = [2, 32], strides = [1, 1]} : vector<2x64xf32> to vector<2x32xf32>
    %c14_46 = arith.constant 14 : index
    %c0_47 = arith.constant 0 : index
    %206 = vector.load %arg10[%c14_46, %c0_47] : memref<16x64xf32, #tpu.memory_space<vmem>>, vector<2x32xf32>
    tpu.vector_store %arg10[%c14_46, %c0_47], %205 {strides = array<i32>} : memref<16x64xf32, #tpu.memory_space<vmem>>, vector<2x32xf32>,
    %207 = vector.extract_strided_slice %204 {offsets = [0, 32], sizes = [2, 32], strides = [1, 1]} : vector<2x64xf32> to vector<2x32xf32>
    %c0_48 = arith.constant 0 : index
    %c32_49 = arith.constant 32 : index
    %208 = vector.load %arg10[%c0_48, %c32_49] : memref<16x64xf32, #tpu.memory_space<vmem>>, vector<2x32xf32>
    tpu.vector_store %arg10[%c0_48, %c32_49], %207 {strides = array<i32>} : memref<16x64xf32, #tpu.memory_space<vmem>>, vector<2x32xf32>,
    %209 = arith.addf %184, %204 : vector<2x64xf32>
    %c0_50 = arith.constant 0 : index
    %c0_51 = arith.constant 0 : index
    %210 = vector.load %arg10[%c0_50, %c0_51] : memref<16x64xf32, #tpu.memory_space<vmem>>, vector<16x64xf32>
    %c0_52 = arith.constant 0 : index
    %c0_53 = arith.constant 0 : index
    %211 = vector.load %arg4[%c0_52, %c0_53] : memref<64x128xf32, #tpu.memory_space<vmem>>, vector<64x128xf32>
    %cst_54 = arith.constant dense<0.000000e+00> : vector<16x128xf32>
    %212 = tpu.matmul %210, %211, %cst_54 {dimension_numbers = #tpu.dot_dimension_numbers<[1], [0], [0], [1], [0, 0, 1, 1], [], []>} : vector<16x64xf32>, vector<64x128xf32>, vector<16x128xf32> -> vector<16x128xf32>
    %c0_55 = arith.constant 0 : index
    %c0_56 = arith.constant 0 : index
    %213 = vector.load %arg5[%c0_55, %c0_56] : memref<1x128xf32, #tpu.memory_space<vmem>>, vector<1x128xf32>
    %214 = vector.broadcast %213 : vector<1x128xf32> to vector<16x128xf32>
    %215 = arith.addf %212, %214 : vector<16x128xf32>
    %c0_57 = arith.constant 0 : index
    %c0_58 = arith.constant 0 : index
    %216 = vector.load %arg8[%c0_57, %c0_58] : memref<16x128xf32, #tpu.memory_space<vmem>>, vector<16x128xf32>
    tpu.vector_store %arg8[%c0_57, %c0_58], %215 {strides = array<i32>} : memref<16x128xf32, #tpu.memory_space<vmem>>, vector<16x128xf32>,
    %cst_59 = arith.constant 1.250000e-01 : f32
    %217 = vector.broadcast %cst_59 : f32 to vector<2x64xf32>
    %218 = arith.mulf %209, %217 : vector<2x64xf32>
    %c0_60 = arith.constant 0 : index
    %c0_61 = arith.constant 0 : index
    %219 = vector.load %arg6[%c0_60, %c0_61] : memref<64x128xf32, #tpu.memory_space<vmem>>, vector<64x128xf32>
    %cst_62 = arith.constant dense<0.000000e+00> : vector<2x128xf32>
    %220 = tpu.matmul %218, %219, %cst_62 {dimension_numbers = #tpu.dot_dimension_numbers<[1], [0], [0], [1], [0, 0, 1, 1], [], []>} : vector<2x64xf32>, vector<64x128xf32>, vector<2x128xf32> -> vector<2x128xf32>
    %c0_63 = arith.constant 0 : index
    %c0_64 = arith.constant 0 : index
    %221 = vector.load %arg7[%c0_63, %c0_64] : memref<1x128xf32, #tpu.memory_space<vmem>>, vector<1x128xf32>
    %222 = vector.broadcast %221 : vector<1x128xf32> to vector<2x128xf32>
    %223 = arith.addf %220, %222 : vector<2x128xf32>
    %c0_65 = arith.constant 0 : index
    %c0_66 = arith.constant 0 : index
    %224 = vector.load %arg9[%c0_65, %c0_66] : memref<2x128xf32, #tpu.memory_space<vmem>>, vector<2x128xf32>
    tpu.vector_store %arg9[%c0_65, %c0_66], %223 {strides = array<i32>} : memref<2x128xf32, #tpu.memory_space<vmem>>, vector<2x128xf32>,
    return
  }
}

</mosaic_0001>

<llo_original>
// kernel: model_forward.1
$region0: #{model_forward.1}
  #allocation0 [shape = 'u32[]', space=smem, size = 0x4, offset = 0x4, fixed_abs, tag = 'smem constant byte address 0x4 - core index']
  #allocation1 [shape = 'u32[72,128]{1,0:T(1,128)}', space=vmem, size = 0x9000, scoped, tag = 'internal scratch']
  #allocation2 [shape = 'f32[16,64]{1,0:T(8,128)}', space=vmem, size = 0x2000, scoped, tag = 'scratch operand']
  %s0 = inlined_call_operand.vmem [shape: f32[16,64], index: 0, kind: input, shape index: {}]
  %s1 = inlined_call_operand.vmem [shape: f32[64,256], index: 1, kind: input, shape index: {}]
  %s2 = inlined_call_operand.vmem [shape: bf16[64,256], index: 2, kind: input, shape index: {}]
  %s3 = inlined_call_operand.vmem [shape: f32[1,256], index: 3, kind: input, shape index: {}]
  %s4 = inlined_call_operand.vmem [shape: f32[64,128], index: 4, kind: input, shape index: {}]
  %s5 = inlined_call_operand.vmem [shape: f32[1,128], index: 5, kind: input, shape index: {}]
  %s6 = inlined_call_operand.vmem [shape: f32[64,128], index: 6, kind: input, shape index: {}]
  %s7 = inlined_call_operand.vmem [shape: f32[1,128], index: 7, kind: input, shape index: {}]
  %s8 = inlined_call_operand.vmem [shape: f32[16,128], index: 8, kind: output, shape index: {0}]
  %s9 = inlined_call_operand.hbm [shape: f32[2,128], index: 9, kind: output, shape index: {1}]
  %10 = xla_tuple %s8, %s9
  %s11 = sld [smem:[#allocation0]]
  $region50: #{model_forward.1} parent=0
    _
  %s13 = ssub.s32 1, %s11
  %s14 = scalar_select 0, %s13, %s11
  $region1: #{model_forward.1} parent=0
    #allocation3 [shape = 'u8[1024]{0}', space=vmem, size = 0x400, scoped, tag = 'output window, operand 1, single buffered']
    #allocation4 [shape = 's32[1]{0}', space=sflag, size = 0x4, scoped, tag = 'scoped memory for model_forward.1']
    %15 = vsyncpa [#allocation4], 0
    // Predicated region
    $region2: #{model_forward.1} parent=1 // pred_check
      _
    $region3: #{model_forward.1} parent=1 // pred_check_branch
      %17 = sbr.rel (0) target = $region5
    $region4: #{model_forward.1} parent=1 // pred_region
      _
    $region5: #{model_forward.1} parent=1 // pred_fallthru
      _
    // Predicated region
    $region6: #{model_forward.1} parent=1 // pred_check
      _
    $region7: #{model_forward.1} parent=1 // pred_check_branch
      %19 = sbr.rel (0) target = $region9
    $region8: #{model_forward.1} parent=1 // pred_region
      _
    $region9: #{model_forward.1} parent=1 // pred_fallthru
      _
    // Predicated region
    $region10: #{model_forward.1} parent=1 // pred_check
      _
    $region11: #{model_forward.1} parent=1 // pred_check_branch
      %21 = sbr.rel (0) target = $region13
    $region12: #{model_forward.1} parent=1 // pred_region
      _
    $region13: #{model_forward.1} parent=1 // pred_fallthru
      _
    // Predicated region
    $region14: #{model_forward.1} parent=1 // pred_check
      _
    $region15: #{model_forward.1} parent=1 // pred_check_branch
      %23 = sbr.rel (0) target = $region17
    $region16: #{model_forward.1} parent=1 // pred_region
      _
    $region17: #{model_forward.1} parent=1 // pred_fallthru
      _
    // Predicated region
    $region18: #{model_forward.1} parent=1 // pred_check
      _
    $region19: #{model_forward.1} parent=1 // pred_check_branch
      %25 = sbr.rel (0) target = $region21
    $region20: #{model_forward.1} parent=1 // pred_region
      _
    $region21: #{model_forward.1} parent=1 // pred_fallthru
      _
    // Predicated region
    $region22: #{model_forward.1} parent=1 // pred_check
      _
    $region23: #{model_forward.1} parent=1 // pred_check_branch
      %27 = sbr.rel (0) target = $region25
    $region24: #{model_forward.1} parent=1 // pred_region
      _
    $region25: #{model_forward.1} parent=1 // pred_fallthru
      _
    // Predicated region
    $region26: #{model_forward.1} parent=1 // pred_check
      _
    $region27: #{model_forward.1} parent=1 // pred_check_branch
      %29 = sbr.rel (0) target = $region29
    $region28: #{model_forward.1} parent=1 // pred_region
      _
    $region29: #{model_forward.1} parent=1 // pred_fallthru
      _
    // Predicated region
    $region30: #{model_forward.1} parent=1 // pred_check
      _
    $region31: #{model_forward.1} parent=1 // pred_check_branch
      %31 = sbr.rel (0) target = $region33
    $region32: #{model_forward.1} parent=1 // pred_region
      _
    $region33: #{model_forward.1} parent=1 // pred_fallthru
      _
    %v33 = vld [vmem:[%s0] sm:$0xff]
    %v34 = vld [vmem:[%s0 + $0x8] sm:$0xff]
    %v35 = vld [vmem:[%s1] sm:$0xff]
    %v36 = vld [vmem:[%s1 + $0x8] sm:$0xff]
    %v37 = vld [vmem:[%s1 + $0x10] sm:$0xff]
    %v38 = vld [vmem:[%s1 + $0x18] sm:$0xff]
    %v39 = vld [vmem:[%s1 + $0x20] sm:$0xff]
    %v40 = vld [vmem:[%s1 + $0x28] sm:$0xff]
    %v41 = vld [vmem:[%s1 + $0x30] sm:$0xff]
    %v42 = vld [vmem:[%s1 + $0x38] sm:$0xff]
    %v43 = vld [vmem:[%s1 + $0x40] sm:$0xff]
    %v44 = vld [vmem:[%s1 + $0x48] sm:$0xff]
    %v45 = vld [vmem:[%s1 + $0x50] sm:$0xff]
    %v46 = vld [vmem:[%s1 + $0x58] sm:$0xff]
    %v47 = vld [vmem:[%s1 + $0x60] sm:$0xff]
    %v48 = vld [vmem:[%s1 + $0x68] sm:$0xff]
    %v49 = vld [vmem:[%s1 + $0x70] sm:$0xff]
    %v50 = vld [vmem:[%s1 + $0x78] sm:$0xff]
    %v51 = vld [vmem:[%s3] sm:$0x3]
    %v53 = vperm.slane %v51, 0
    %v54 = vperm.slane %v51, 1
    %vm57 = vcmask 523264
    %v59 = vsel %vm57, %v33, 0
    %v62 = vsel %vm57, %v34, 0
    %64 = vmatpush.msra.mxu0 0.0
    %65 = vmatpush.msra.mxu0 0.0
    %66 = vmatpush.msra.mxu0 0.0
    %67 = vmatpush.msra.mxu0 0.0
    %68 = vmatpush.msra.mxu0 0.0
    %69 = vmatpush.msra.mxu0 0.0
    %70 = vmatpush.msra.mxu0 0.0
    %71 = vmatpush.msra.mxu0 0.0
    %72 = vmatpush.msra.mxu0 %v49
    %73 = vmatpush.msra.mxu0 %v47
    %74 = vmatpush.msra.mxu0 %v45
    %75 = vmatpush.msra.mxu0 %v43
    %76 = vmatpush.msra.mxu0 %v41
    %77 = vmatpush.msra.mxu0 %v39
    %78 = vmatpush.msra.mxu0 %v37
    %79 = vmatpush.msra.mxu0 %v35
    %80 = vmatmul.f32.gmra.mxu0 %v59
    %v81 = vpop.f32.mrf.mxu0
    %v82 = vadd.f32 %v53, %v81
    %83 = vmatmul.f32.gmra.mxu0 %v62
    %v84 = vpop.f32.mrf.mxu0
    %v85 = vadd.f32 %v53, %v84
    %86 = vdwg.mxu0
    %87 = vmatpush.msra.mxu0 0.0
    %88 = vmatpush.msra.mxu0 0.0
    %89 = vmatpush.msra.mxu0 0.0
    %90 = vmatpush.msra.mxu0 0.0
    %91 = vmatpush.msra.mxu0 0.0
    %92 = vmatpush.msra.mxu0 0.0
    %93 = vmatpush.msra.mxu0 0.0
    %94 = vmatpush.msra.mxu0 0.0
    %95 = vmatpush.msra.mxu0 %v50
    %96 = vmatpush.msra.mxu0 %v48
    %97 = vmatpush.msra.mxu0 %v46
    %98 = vmatpush.msra.mxu0 %v44
    %99 = vmatpush.msra.mxu0 %v42
    %100 = vmatpush.msra.mxu0 %v40
    %101 = vmatpush.msra.mxu0 %v38
    %102 = vmatpush.msra.mxu0 %v36
    %103 = vmatmul.f32.gmra.mxu0 %v59
    %v104 = vpop.f32.mrf.mxu0
    %v105 = vadd.f32 %v54, %v104
    %106 = vmatmul.f32.gmra.mxu0 %v62
    %v107 = vpop.f32.mrf.mxu0
    %v108 = vadd.f32 %v54, %v107
    %109 = vdwg.mxu0
    %v110 = vld [vmem:[%s2] sm:$0xff]
    %v111 = vld [vmem:[%s2 + $0x8] sm:$0xff]
    %v112 = vld [vmem:[%s2 + $0x10] sm:$0xff]
    %v113 = vld [vmem:[%s2 + $0x18] sm:$0xff]
    %v114 = vld [vmem:[%s2 + $0x20] sm:$0xff]
    %v115 = vld [vmem:[%s2 + $0x28] sm:$0xff]
    %v116 = vld [vmem:[%s2 + $0x30] sm:$0xff]
    %v117 = vld [vmem:[%s2 + $0x38] sm:$0xff]
    %v126 = vunpack.c.l.b16 %v110
    %v127 = vunpack.c.h.b16 %v110
    %v128 = vunpack.c.l.b16 %v111
    %v129 = vunpack.c.h.b16 %v111
    %v130 = vunpack.c.l.b16 %v112
    %v131 = vunpack.c.h.b16 %v112
    %v132 = vunpack.c.l.b16 %v113
    %v133 = vunpack.c.h.b16 %v113
    %v134 = vunpack.c.l.b16 %v114
    %v135 = vunpack.c.h.b16 %v114
    %v136 = vunpack.c.l.b16 %v115
    %v137 = vunpack.c.h.b16 %v115
    %v138 = vunpack.c.l.b16 %v116
    %v139 = vunpack.c.h.b16 %v116
    %v140 = vunpack.c.l.b16 %v117
    %v141 = vunpack.c.h.b16 %v117
    %v142 = vpack.c.b16 %v128, %v126
    %v143 = vpack.c.b16 %v129, %v127
    %v144 = vpack.c.b16 %v132, %v130
    %v145 = vpack.c.b16 %v133, %v131
    %v146 = vpack.c.b16 %v136, %v134
    %v147 = vpack.c.b16 %v137, %v135
    %v148 = vpack.c.b16 %v140, %v138
    %v149 = vpack.c.b16 %v141, %v139
    %v159 = vsel %vm57, 0, 0
    %161 = vmatpush.bf16.msra.mxu0 0
    %162 = vmatpush.bf16.msra.mxu0 0
    %163 = vmatpush.bf16.msra.mxu0 0
    %164 = vmatpush.bf16.msra.mxu0 0
    %165 = vmatpush.bf16.msra.mxu0 %v148
    %166 = vmatpush.bf16.msra.mxu0 %v146
    %167 = vmatpush.bf16.msra.mxu0 %v144
    %168 = vmatpush.bf16.msra.mxu0 %v142
    %169 = vmatmul.bf16.gmra.mxu0 %v159
    %v170 = vpop.f32.mrf.mxu0
    %v171 = vadd.f32 0.0, %v170
    %v172 = vpop.f32.mrf.mxu0
    %173 = vdwg.mxu0
    %174 = vmatpush.bf16.msra.mxu0 0
    %175 = vmatpush.bf16.msra.mxu0 0
    %176 = vmatpush.bf16.msra.mxu0 0
    %177 = vmatpush.bf16.msra.mxu0 0
    %178 = vmatpush.bf16.msra.mxu0 %v149
    %179 = vmatpush.bf16.msra.mxu0 %v147
    %180 = vmatpush.bf16.msra.mxu0 %v145
    %181 = vmatpush.bf16.msra.mxu0 %v143
    %182 = vmatmul.bf16.gmra.mxu0 %v159
    %v183 = vpop.f32.mrf.mxu0
    %v184 = vadd.f32 0.0, %v183
    %v185 = vpop.f32.mrf.mxu0
    %186 = vdwg.mxu0
    %v187 = vadd.f32 %v82, %v171
    %v188 = vadd.f32 %v105, %v184
    %v189 = vxor.u32 %v187, 2147483648
    %v190 = vxor.u32 %v188, 2147483648
    %v191 = vmul.f32 %v189, 1.442695
    %v192 = vpow.pop %v191
    %v193 = vmul.f32 %v190, 1.442695
    %v194 = vpow.pop %v193
    %v195 = vadd.f32 %v192, 1.0
    %v196 = vadd.f32 %v194, 1.0
    %v197 = vrcp.pop %v195
    %v198 = vmul.f32 %v195, %v197
    %v199 = vsub.f32 1.0, %v198
    %v200 = vmul.f32 %v197, %v199
    %v201 = vadd.f32 %v197, %v200
    %vm202 = vweird.f32 %v195
    %vm203 = vweird.f32 %v197
    %vm204 = vmor %vm202, %vm203
    %v205 = vsel %vm204, %v197, %v201
    %v206 = vand.u32 2147483647, %v195
    %vm207 = vcmp.eq.f32.partialorder %v206, 8.507059e+37
    %v208 = vand.u32 %v195, 2147483648
    %v209 = vor.u32 1.1754944e-38, %v208
    %v210 = vsel %vm207, %v209, %v205
    %v211 = vmul.f32 1.0, %v210
    %v212 = vrcp.pop %v196
    %v213 = vmul.f32 %v196, %v212
    %v214 = vsub.f32 1.0, %v213
    %v215 = vmul.f32 %v212, %v214
    %v216 = vadd.f32 %v212, %v215
    %vm217 = vweird.f32 %v196
    %vm218 = vweird.f32 %v212
    %vm219 = vmor %vm217, %vm218
    %v220 = vsel %vm219, %v212, %v216
    %v221 = vand.u32 2147483647, %v196
    %vm222 = vcmp.eq.f32.partialorder %v221, 8.507059e+37
    %v223 = vand.u32 %v196, 2147483648
    %v224 = vor.u32 1.1754944e-38, %v223
    %v225 = vsel %vm222, %v224, %v220
    %v226 = vmul.f32 1.0, %v225
    %v227 = vtanh.pop %v188
    %v228 = vmul.f32 %v211, 0.0
    %230 = vrot.lane.b32.xlu0 %v227, 64
    %v231 = vpop.permute.xlu0 %230
    %v233 = vmul.f32 %v211, %v231
    %235 = vrot.lane.b32.xlu0 %v233, 64
    %v236 = vpop.permute.xlu0 %235
    %v238 = vadd.f32 %v228, %v236
    %v239 = vtanh.pop %v238
    %241 = vrot.lane.b32.xlu0 %v239, 64
    %v242 = vpop.permute.xlu0 %241
    %v244 = vmul.f32 %v226, %v242
    %vm245 = vcmask 254976
    %246 = vst.msk [vmem:[#allocation2] sm:$0x3] %vm245, %v244
    %vm247 = vcmask 517376
    %248 = vst.msk [vmem:[#allocation2 + $0xe] sm:$0x3] %vm247, %v244
    %v249 = vadd.f32 %v244, 0.0
    %v250 = vpack.c.bf16 %v244, %v244
    %v252 = vsel %vm57, %v250, 0
    %254 = vmatpush.bf16.msra.mxu0 0
    %255 = vmatpush.bf16.msra.mxu0 0
    %256 = vmatpush.bf16.msra.mxu0 0
    %257 = vmatpush.bf16.msra.mxu0 0
    %258 = vmatpush.bf16.msra.mxu0 %v148
    %259 = vmatpush.bf16.msra.mxu0 %v146
    %260 = vmatpush.bf16.msra.mxu0 %v144
    %261 = vmatpush.bf16.msra.mxu0 %v142
    %262 = vmatmul.bf16.gmra.mxu0 %v252
    %v263 = vpop.f32.mrf.mxu0
    %v264 = vadd.f32 0.0, %v263
    %v265 = vpop.f32.mrf.mxu0
    %266 = vdwg.mxu0
    %267 = vmatpush.bf16.msra.mxu0 0
    %268 = vmatpush.bf16.msra.mxu0 0
    %269 = vmatpush.bf16.msra.mxu0 0
    %270 = vmatpush.bf16.msra.mxu0 0
    %271 = vmatpush.bf16.msra.mxu0 %v149
    %272 = vmatpush.bf16.msra.mxu0 %v147
    %273 = vmatpush.bf16.msra.mxu0 %v145
    %274 = vmatpush.bf16.msra.mxu0 %v143
    %275 = vmatmul.bf16.gmra.mxu0 %v252
    %v276 = vpop.f32.mrf.mxu0
    %v277 = vadd.f32 0.0, %v276
    %v278 = vpop.f32.mrf.mxu0
    %279 = vdwg.mxu0
    %v282 = vrot.slane %v264, 6
    %v283 = vrot.slane %v277, 6
    %v286 = vadd.f32 %v82, %v282
    %v287 = vadd.f32 %v105, %v283
    %v288 = vxor.u32 %v286, 2147483648
    %v289 = vxor.u32 %v287, 2147483648
    %v290 = vmul.f32 %v288, 1.442695
    %v291 = vpow.pop %v290
    %v292 = vmul.f32 %v289, 1.442695
    %v293 = vpow.pop %v292
    %v294 = vadd.f32 %v291, 1.0
    %v295 = vadd.f32 %v293, 1.0
    %v296 = vrcp.pop %v294
    %v297 = vmul.f32 %v294, %v296
    %v298 = vsub.f32 1.0, %v297
    %v299 = vmul.f32 %v296, %v298
    %v300 = vadd.f32 %v296, %v299
    %vm301 = vweird.f32 %v294
    %vm302 = vweird.f32 %v296
    %vm303 = vmor %vm301, %vm302
    %v304 = vsel %vm303, %v296, %v300
    %v305 = vand.u32 2147483647, %v294
    %vm306 = vcmp.eq.f32.partialorder %v305, 8.507059e+37
    %v307 = vand.u32 %v294, 2147483648
    %v308 = vor.u32 1.1754944e-38, %v307
    %v309 = vsel %vm306, %v308, %v304
    %v310 = vmul.f32 1.0, %v309
    %v311 = vrcp.pop %v295
    %v312 = vmul.f32 %v295, %v311
    %v313 = vsub.f32 1.0, %v312
    %v314 = vmul.f32 %v311, %v313
    %v315 = vadd.f32 %v311, %v314
    %vm316 = vweird.f32 %v295
    %vm317 = vweird.f32 %v311
    %vm318 = vmor %vm316, %vm317
    %v319 = vsel %vm318, %v311, %v315
    %v320 = vand.u32 2147483647, %v295
    %vm321 = vcmp.eq.f32.partialorder %v320, 8.507059e+37
    %v322 = vand.u32 %v295, 2147483648
    %v323 = vor.u32 1.1754944e-38, %v322
    %v324 = vsel %vm321, %v323, %v319
    %v325 = vmul.f32 1.0, %v324
    %v326 = vtanh.pop %v287
    %v328 = vrot.slane %v238, 6
    %v330 = vmul.f32 %v310, %v328
    %332 = vrot.lane.b32.xlu0 %v326, 64
    %v333 = vpop.permute.xlu0 %332
    %v335 = vmul.f32 %v310, %v333
    %337 = vrot.lane.b32.xlu0 %v335, 64
    %v338 = vpop.permute.xlu0 %337
    %v340 = vadd.f32 %v330, %v338
    %v341 = vtanh.pop %v340
    %343 = vrot.lane.b32.xlu0 %v341, 64
    %v344 = vpop.permute.xlu0 %343
    %v346 = vmul.f32 %v325, %v344
    %vm347 = vcmask 257026
    %348 = vst.msk [vmem:[#allocation2] sm:$0xc] %vm347, %v346
    %vm349 = vcmask 519426
    %350 = vst.msk [vmem:[#allocation2 + $0xa] sm:$0xc] %vm349, %v346
    %v352 = vrot.slane %v346, 2
    %v354 = vadd.f32 %v249, %v352
    %v355 = vpack.c.bf16 %v346, %v346
    %v357 = vrot.slane %v355, 1
    %v359 = vsel %vm57, %v357, 0
    %361 = vmatpush.bf16.msra.mxu0 0
    %362 = vmatpush.bf16.msra.mxu0 0
    %363 = vmatpush.bf16.msra.mxu0 0
    %364 = vmatpush.bf16.msra.mxu0 0
    %365 = vmatpush.bf16.msra.mxu0 %v148
    %366 = vmatpush.bf16.msra.mxu0 %v146
    %367 = vmatpush.bf16.msra.mxu0 %v144
    %368 = vmatpush.bf16.msra.mxu0 %v142
    %369 = vmatmul.bf16.gmra.mxu0 %v359
    %v370 = vpop.f32.mrf.mxu0
    %v371 = vadd.f32 0.0, %v370
    %v372 = vpop.f32.mrf.mxu0
    %373 = vdwg.mxu0
    %374 = vmatpush.bf16.msra.mxu0 0
    %375 = vmatpush.bf16.msra.mxu0 0
    %376 = vmatpush.bf16.msra.mxu0 0
    %377 = vmatpush.bf16.msra.mxu0 0
    %378 = vmatpush.bf16.msra.mxu0 %v149
    %379 = vmatpush.bf16.msra.mxu0 %v147
    %380 = vmatpush.bf16.msra.mxu0 %v145
    %381 = vmatpush.bf16.msra.mxu0 %v143
    %382 = vmatmul.bf16.gmra.mxu0 %v359
    %v383 = vpop.f32.mrf.mxu0
    %v384 = vadd.f32 0.0, %v383
    %v385 = vpop.f32.mrf.mxu0
    %386 = vdwg.mxu0
    %v389 = vrot.slane %v371, 4
    %v390 = vrot.slane %v384, 4
    %v393 = vadd.f32 %v82, %v389
    %v394 = vadd.f32 %v105, %v390
    %v395 = vxor.u32 %v393, 2147483648
    %v396 = vxor.u32 %v394, 2147483648
    %v397 = vmul.f32 %v395, 1.442695
    %v398 = vpow.pop %v397
    %v399 = vmul.f32 %v396, 1.442695
    %v400 = vpow.pop %v399
    %v401 = vadd.f32 %v398, 1.0
    %v402 = vadd.f32 %v400, 1.0
    %v403 = vrcp.pop %v401
    %v404 = vmul.f32 %v401, %v403
    %v405 = vsub.f32 1.0, %v404
    %v406 = vmul.f32 %v403, %v405
    %v407 = vadd.f32 %v403, %v406
    %vm408 = vweird.f32 %v401
    %vm409 = vweird.f32 %v403
    %vm410 = vmor %vm408, %vm409
    %v411 = vsel %vm410, %v403, %v407
    %v412 = vand.u32 2147483647, %v401
    %vm413 = vcmp.eq.f32.partialorder %v412, 8.507059e+37
    %v414 = vand.u32 %v401, 2147483648
    %v415 = vor.u32 1.1754944e-38, %v414
    %v416 = vsel %vm413, %v415, %v411
    %v417 = vmul.f32 1.0, %v416
    %v418 = vrcp.pop %v402
    %v419 = vmul.f32 %v402, %v418
    %v420 = vsub.f32 1.0, %v419
    %v421 = vmul.f32 %v418, %v420
    %v422 = vadd.f32 %v418, %v421
    %vm423 = vweird.f32 %v402
    %vm424 = vweird.f32 %v418
    %vm425 = vmor %vm423, %vm424
    %v426 = vsel %vm425, %v418, %v422
    %v427 = vand.u32 2147483647, %v402
    %vm428 = vcmp.eq.f32.partialorder %v427, 8.507059e+37
    %v429 = vand.u32 %v402, 2147483648
    %v430 = vor.u32 1.1754944e-38, %v429
    %v431 = vsel %vm428, %v430, %v426
    %v432 = vmul.f32 1.0, %v431
    %v433 = vtanh.pop %v394
    %v435 = vrot.slane %v340, 6
    %v437 = vmul.f32 %v417, %v435
    %439 = vrot.lane.b32.xlu0 %v433, 64
    %v440 = vpop.permute.xlu0 %439
    %v442 = vmul.f32 %v417, %v440
    %444 = vrot.lane.b32.xlu0 %v442, 64
    %v445 = vpop.permute.xlu0 %444
    %v447 = vadd.f32 %v437, %v445
    %v448 = vtanh.pop %v447
    %450 = vrot.lane.b32.xlu0 %v448, 64
    %v451 = vpop.permute.xlu0 %450
    %v453 = vmul.f32 %v432, %v451
    %vm454 = vcmask 259076
    %455 = vst.msk [vmem:[#allocation2] sm:$0x30] %vm454, %v453
    %vm456 = vcmask 521476
    %457 = vst.msk [vmem:[#allocation2 + $0x6] sm:$0x30] %vm456, %v453
    %v459 = vrot.slane %v453, 4
    %v461 = vadd.f32 %v354, %v459
    %v462 = vpack.c.bf16 %v453, %v453
    %v464 = vrot.slane %v462, 2
    %v466 = vsel %vm57, %v464, 0
    %468 = vmatpush.bf16.msra.mxu0 0
    %469 = vmatpush.bf16.msra.mxu0 0
    %470 = vmatpush.bf16.msra.mxu0 0
    %471 = vmatpush.bf16.msra.mxu0 0
    %472 = vmatpush.bf16.msra.mxu0 %v148
    %473 = vmatpush.bf16.msra.mxu0 %v146
    %474 = vmatpush.bf16.msra.mxu0 %v144
    %475 = vmatpush.bf16.msra.mxu0 %v142
    %476 = vmatmul.bf16.gmra.mxu0 %v466
    %v477 = vpop.f32.mrf.mxu0
    %v478 = vadd.f32 0.0, %v477
    %v479 = vpop.f32.mrf.mxu0
    %480 = vdwg.mxu0
    %481 = vmatpush.bf16.msra.mxu0 0
    %482 = vmatpush.bf16.msra.mxu0 0
    %483 = vmatpush.bf16.msra.mxu0 0
    %484 = vmatpush.bf16.msra.mxu0 0
    %485 = vmatpush.bf16.msra.mxu0 %v149
    %486 = vmatpush.bf16.msra.mxu0 %v147
    %487 = vmatpush.bf16.msra.mxu0 %v145
    %488 = vmatpush.bf16.msra.mxu0 %v143
    %489 = vmatmul.bf16.gmra.mxu0 %v466
    %v490 = vpop.f32.mrf.mxu0
    %v491 = vadd.f32 0.0, %v490
    %v492 = vpop.f32.mrf.mxu0
    %493 = vdwg.mxu0
    %v496 = vrot.slane %v478, 2
    %v497 = vrot.slane %v491, 2
    %v500 = vadd.f32 %v82, %v496
    %v501 = vadd.f32 %v105, %v497
    %v502 = vxor.u32 %v500, 2147483648
    %v503 = vxor.u32 %v501, 2147483648
    %v504 = vmul.f32 %v502, 1.442695
    %v505 = vpow.pop %v504
    %v506 = vmul.f32 %v503, 1.442695
    %v507 = vpow.pop %v506
    %v508 = vadd.f32 %v505, 1.0
    %v509 = vadd.f32 %v507, 1.0
    %v510 = vrcp.pop %v508
    %v511 = vmul.f32 %v508, %v510
    %v512 = vsub.f32 1.0, %v511
    %v513 = vmul.f32 %v510, %v512
    %v514 = vadd.f32 %v510, %v513
    %vm515 = vweird.f32 %v508
    %vm516 = vweird.f32 %v510
    %vm517 = vmor %vm515, %vm516
    %v518 = vsel %vm517, %v510, %v514
    %v519 = vand.u32 2147483647, %v508
    %vm520 = vcmp.eq.f32.partialorder %v519, 8.507059e+37
    %v521 = vand.u32 %v508, 2147483648
    %v522 = vor.u32 1.1754944e-38, %v521
    %v523 = vsel %vm520, %v522, %v518
    %v524 = vmul.f32 1.0, %v523
    %v525 = vrcp.pop %v509
    %v526 = vmul.f32 %v509, %v525
    %v527 = vsub.f32 1.0, %v526
    %v528 = vmul.f32 %v525, %v527
    %v529 = vadd.f32 %v525, %v528
    %vm530 = vweird.f32 %v509
    %vm531 = vweird.f32 %v525
    %vm532 = vmor %vm530, %vm531
    %v533 = vsel %vm532, %v525, %v529
    %v534 = vand.u32 2147483647, %v509
    %vm535 = vcmp.eq.f32.partialorder %v534, 8.507059e+37
    %v536 = vand.u32 %v509, 2147483648
    %v537 = vor.u32 1.1754944e-38, %v536
    %v538 = vsel %vm535, %v537, %v533
    %v539 = vmul.f32 1.0, %v538
    %v540 = vtanh.pop %v501
    %v542 = vrot.slane %v447, 6
    %v544 = vmul.f32 %v524, %v542
    %546 = vrot.lane.b32.xlu0 %v540, 64
    %v547 = vpop.permute.xlu0 %546
    %v549 = vmul.f32 %v524, %v547
    %551 = vrot.lane.b32.xlu0 %v549, 64
    %v552 = vpop.permute.xlu0 %551
    %v554 = vadd.f32 %v544, %v552
    %v555 = vtanh.pop %v554
    %557 = vrot.lane.b32.xlu0 %v555, 64
    %v558 = vpop.permute.xlu0 %557
    %v560 = vmul.f32 %v539, %v558
    %vm561 = vcmask 261126
    %562 = vst.msk [vmem:[#allocation2] sm:$0xc0] %vm561, %v560
    %vm563 = vcmask 523526
    %564 = vst.msk [vmem:[#allocation2 + $0x2] sm:$0xc0] %vm563, %v560
    %v566 = vrot.slane %v560, 6
    %v568 = vadd.f32 %v461, %v566
    %v569 = vpack.c.bf16 %v560, %v560
    %v571 = vrot.slane %v569, 3
    %v573 = vsel %vm57, %v571, 0
    %575 = vmatpush.bf16.msra.mxu0 0
    %576 = vmatpush.bf16.msra.mxu0 0
    %577 = vmatpush.bf16.msra.mxu0 0
    %578 = vmatpush.bf16.msra.mxu0 0
    %579 = vmatpush.bf16.msra.mxu0 %v148
    %580 = vmatpush.bf16.msra.mxu0 %v146
    %581 = vmatpush.bf16.msra.mxu0 %v144
    %582 = vmatpush.bf16.msra.mxu0 %v142
    %583 = vmatmul.bf16.gmra.mxu0 %v573
    %v584 = vpop.f32.mrf.mxu0
    %v585 = vadd.f32 0.0, %v584
    %v586 = vpop.f32.mrf.mxu0
    %587 = vdwg.mxu0
    %588 = vmatpush.bf16.msra.mxu0 0
    %589 = vmatpush.bf16.msra.mxu0 0
    %590 = vmatpush.bf16.msra.mxu0 0
    %591 = vmatpush.bf16.msra.mxu0 0
    %592 = vmatpush.bf16.msra.mxu0 %v149
    %593 = vmatpush.bf16.msra.mxu0 %v147
    %594 = vmatpush.bf16.msra.mxu0 %v145
    %595 = vmatpush.bf16.msra.mxu0 %v143
    %596 = vmatmul.bf16.gmra.mxu0 %v573
    %v597 = vpop.f32.mrf.mxu0
    %v598 = vadd.f32 0.0, %v597
    %v599 = vpop.f32.mrf.mxu0
    %600 = vdwg.mxu0
    %v601 = vadd.f32 %v85, %v585
    %v602 = vadd.f32 %v108, %v598
    %v603 = vxor.u32 %v601, 2147483648
    %v604 = vxor.u32 %v602, 2147483648
    %v605 = vmul.f32 %v603, 1.442695
    %v606 = vpow.pop %v605
    %v607 = vmul.f32 %v604, 1.442695
    %v608 = vpow.pop %v607
    %v609 = vadd.f32 %v606, 1.0
    %v610 = vadd.f32 %v608, 1.0
    %v611 = vrcp.pop %v609
    %v612 = vmul.f32 %v609, %v611
    %v613 = vsub.f32 1.0, %v612
    %v614 = vmul.f32 %v611, %v613
    %v615 = vadd.f32 %v611, %v614
    %vm616 = vweird.f32 %v609
    %vm617 = vweird.f32 %v611
    %vm618 = vmor %vm616, %vm617
    %v619 = vsel %vm618, %v611, %v615
    %v620 = vand.u32 2147483647, %v609
    %vm621 = vcmp.eq.f32.partialorder %v620, 8.507059e+37
    %v622 = vand.u32 %v609, 2147483648
    %v623 = vor.u32 1.1754944e-38, %v622
    %v624 = vsel %vm621, %v623, %v619
    %v625 = vmul.f32 1.0, %v624
    %v626 = vrcp.pop %v610
    %v627 = vmul.f32 %v610, %v626
    %v628 = vsub.f32 1.0, %v627
    %v629 = vmul.f32 %v626, %v628
    %v630 = vadd.f32 %v626, %v629
    %vm631 = vweird.f32 %v610
    %vm632 = vweird.f32 %v626
    %vm633 = vmor %vm631, %vm632
    %v634 = vsel %vm633, %v626, %v630
    %v635 = vand.u32 2147483647, %v610
    %vm636 = vcmp.eq.f32.partialorder %v635, 8.507059e+37
    %v637 = vand.u32 %v610, 2147483648
    %v638 = vor.u32 1.1754944e-38, %v637
    %v639 = vsel %vm636, %v638, %v634
    %v640 = vmul.f32 1.0, %v639
    %v641 = vtanh.pop %v602
    %v643 = vrot.slane %v554, 6
    %v645 = vmul.f32 %v625, %v643
    %647 = vrot.lane.b32.xlu0 %v641, 64
    %v648 = vpop.permute.xlu0 %647
    %v650 = vmul.f32 %v625, %v648
    %652 = vrot.lane.b32.xlu0 %v650, 64
    %v653 = vpop.permute.xlu0 %652
    %v655 = vadd.f32 %v645, %v653
    %v656 = vtanh.pop %v655
    %658 = vrot.lane.b32.xlu0 %v656, 64
    %v659 = vpop.permute.xlu0 %658
    %v661 = vmul.f32 %v640, %v659
    %662 = vst.msk [vmem:[#allocation2 + $0x8] sm:$0x3] %vm245, %v661
    %663 = vst.msk [vmem:[#allocation2 + $0x6] sm:$0x3] %vm247, %v661
    %v664 = vadd.f32 %v568, %v661
    %v665 = vpack.c.bf16 %v661, %v661
    %v667 = vsel %vm57, %v665, 0
    %669 = vmatpush.bf16.msra.mxu0 0
    %670 = vmatpush.bf16.msra.mxu0 0
    %671 = vmatpush.bf16.msra.mxu0 0
    %672 = vmatpush.bf16.msra.mxu0 0
    %673 = vmatpush.bf16.msra.mxu0 %v148
    %674 = vmatpush.bf16.msra.mxu0 %v146
    %675 = vmatpush.bf16.msra.mxu0 %v144
    %676 = vmatpush.bf16.msra.mxu0 %v142
    %677 = vmatmul.bf16.gmra.mxu0 %v667
    %v678 = vpop.f32.mrf.mxu0
    %v679 = vadd.f32 0.0, %v678
    %v680 = vpop.f32.mrf.mxu0
    %681 = vdwg.mxu0
    %682 = vmatpush.bf16.msra.mxu0 0
    %683 = vmatpush.bf16.msra.mxu0 0
    %684 = vmatpush.bf16.msra.mxu0 0
    %685 = vmatpush.bf16.msra.mxu0 0
    %686 = vmatpush.bf16.msra.mxu0 %v149
    %687 = vmatpush.bf16.msra.mxu0 %v147
    %688 = vmatpush.bf16.msra.mxu0 %v145
    %689 = vmatpush.bf16.msra.mxu0 %v143
    %690 = vmatmul.bf16.gmra.mxu0 %v667
    %v691 = vpop.f32.mrf.mxu0
    %v692 = vadd.f32 0.0, %v691
    %v693 = vpop.f32.mrf.mxu0
    %694 = vdwg.mxu0
    %v697 = vrot.slane %v679, 6
    %v698 = vrot.slane %v692, 6
    %v701 = vadd.f32 %v85, %v697
    %v702 = vadd.f32 %v108, %v698
    %v703 = vxor.u32 %v701, 2147483648
    %v704 = vxor.u32 %v702, 2147483648
    %v705 = vmul.f32 %v703, 1.442695
    %v706 = vpow.pop %v705
    %v707 = vmul.f32 %v704, 1.442695
    %v708 = vpow.pop %v707
    %v709 = vadd.f32 %v706, 1.0
    %v710 = vadd.f32 %v708, 1.0
    %v711 = vrcp.pop %v709
    %v712 = vmul.f32 %v709, %v711
    %v713 = vsub.f32 1.0, %v712
    %v714 = vmul.f32 %v711, %v713
    %v715 = vadd.f32 %v711, %v714
    %vm716 = vweird.f32 %v709
    %vm717 = vweird.f32 %v711
    %vm718 = vmor %vm716, %vm717
    %v719 = vsel %vm718, %v711, %v715
    %v720 = vand.u32 2147483647, %v709
    %vm721 = vcmp.eq.f32.partialorder %v720, 8.507059e+37
    %v722 = vand.u32 %v709, 2147483648
    %v723 = vor.u32 1.1754944e-38, %v722
    %v724 = vsel %vm721, %v723, %v719
    %v725 = vmul.f32 1.0, %v724
    %v726 = vrcp.pop %v710
    %v727 = vmul.f32 %v710, %v726
    %v728 = vsub.f32 1.0, %v727
    %v729 = vmul.f32 %v726, %v728
    %v730 = vadd.f32 %v726, %v729
    %vm731 = vweird.f32 %v710
    %vm732 = vweird.f32 %v726
    %vm733 = vmor %vm731, %vm732
    %v734 = vsel %vm733, %v726, %v730
    %v735 = vand.u32 2147483647, %v710
    %vm736 = vcmp.eq.f32.partialorder %v735, 8.507059e+37
    %v737 = vand.u32 %v710, 2147483648
    %v738 = vor.u32 1.1754944e-38, %v737
    %v739 = vsel %vm736, %v738, %v734
    %v740 = vmul.f32 1.0, %v739
    %v741 = vtanh.pop %v702
    %v743 = vrot.slane %v655, 6
    %v745 = vmul.f32 %v725, %v743
    %747 = vrot.lane.b32.xlu0 %v741, 64
    %v748 = vpop.permute.xlu0 %747
    %v750 = vmul.f32 %v725, %v748
    %752 = vrot.lane.b32.xlu0 %v750, 64
    %v753 = vpop.permute.xlu0 %752
    %v755 = vadd.f32 %v745, %v753
    %v756 = vtanh.pop %v755
    %758 = vrot.lane.b32.xlu0 %v756, 64
    %v759 = vpop.permute.xlu0 %758
    %v761 = vmul.f32 %v740, %v759
    %762 = vst.msk [vmem:[#allocation2 + $0x8] sm:$0xc] %vm347, %v761
    %763 = vst.msk [vmem:[#allocation2 + $0x2] sm:$0xc] %vm349, %v761
    %v765 = vrot.slane %v761, 2
    %v767 = vadd.f32 %v664, %v765
    %v768 = vpack.c.bf16 %v761, %v761
    %v770 = vrot.slane %v768, 1
    %v772 = vsel %vm57, %v770, 0
    %774 = vmatpush.bf16.msra.mxu0 0
    %775 = vmatpush.bf16.msra.mxu0 0
    %776 = vmatpush.bf16.msra.mxu0 0
    %777 = vmatpush.bf16.msra.mxu0 0
    %778 = vmatpush.bf16.msra.mxu0 %v148
    %779 = vmatpush.bf16.msra.mxu0 %v146
    %780 = vmatpush.bf16.msra.mxu0 %v144
    %781 = vmatpush.bf16.msra.mxu0 %v142
    %782 = vmatmul.bf16.gmra.mxu0 %v772
    %v783 = vpop.f32.mrf.mxu0
    %v784 = vadd.f32 0.0, %v783
    %v785 = vpop.f32.mrf.mxu0
    %786 = vdwg.mxu0
    %787 = vmatpush.bf16.msra.mxu0 0
    %788 = vmatpush.bf16.msra.mxu0 0
    %789 = vmatpush.bf16.msra.mxu0 0
    %790 = vmatpush.bf16.msra.mxu0 0
    %791 = vmatpush.bf16.msra.mxu0 %v149
    %792 = vmatpush.bf16.msra.mxu0 %v147
    %793 = vmatpush.bf16.msra.mxu0 %v145
    %794 = vmatpush.bf16.msra.mxu0 %v143
    %795 = vmatmul.bf16.gmra.mxu0 %v772
    %v796 = vpop.f32.mrf.mxu0
    %v797 = vadd.f32 0.0, %v796
    %v798 = vpop.f32.mrf.mxu0
    %799 = vdwg.mxu0
    %v802 = vrot.slane %v784, 4
    %v803 = vrot.slane %v797, 4
    %v806 = vadd.f32 %v85, %v802
    %v807 = vadd.f32 %v108, %v803
    %v808 = vxor.u32 %v806, 2147483648
    %v809 = vxor.u32 %v807, 2147483648
    %v810 = vmul.f32 %v808, 1.442695
    %v811 = vpow.pop %v810
    %v812 = vmul.f32 %v809, 1.442695
    %v813 = vpow.pop %v812
    %v814 = vadd.f32 %v811, 1.0
    %v815 = vadd.f32 %v813, 1.0
    %v816 = vrcp.pop %v814
    %v817 = vmul.f32 %v814, %v816
    %v818 = vsub.f32 1.0, %v817
    %v819 = vmul.f32 %v816, %v818
    %v820 = vadd.f32 %v816, %v819
    %vm821 = vweird.f32 %v814
    %vm822 = vweird.f32 %v816
    %vm823 = vmor %vm821, %vm822
    %v824 = vsel %vm823, %v816, %v820
    %v825 = vand.u32 2147483647, %v814
    %vm826 = vcmp.eq.f32.partialorder %v825, 8.507059e+37
    %v827 = vand.u32 %v814, 2147483648
    %v828 = vor.u32 1.1754944e-38, %v827
    %v829 = vsel %vm826, %v828, %v824
    %v830 = vmul.f32 1.0, %v829
    %v831 = vrcp.pop %v815
    %v832 = vmul.f32 %v815, %v831
    %v833 = vsub.f32 1.0, %v832
    %v834 = vmul.f32 %v831, %v833
    %v835 = vadd.f32 %v831, %v834
    %vm836 = vweird.f32 %v815
    %vm837 = vweird.f32 %v831
    %vm838 = vmor %vm836, %vm837
    %v839 = vsel %vm838, %v831, %v835
    %v840 = vand.u32 2147483647, %v815
    %vm841 = vcmp.eq.f32.partialorder %v840, 8.507059e+37
    %v842 = vand.u32 %v815, 2147483648
    %v843 = vor.u32 1.1754944e-38, %v842
    %v844 = vsel %vm841, %v843, %v839
    %v845 = vmul.f32 1.0, %v844
    %v846 = vtanh.pop %v807
    %v848 = vrot.slane %v755, 6
    %v850 = vmul.f32 %v830, %v848
    %852 = vrot.lane.b32.xlu0 %v846, 64
    %v853 = vpop.permute.xlu0 %852
    %v855 = vmul.f32 %v830, %v853
    %857 = vrot.lane.b32.xlu0 %v855, 64
    %v858 = vpop.permute.xlu0 %857
    %v860 = vadd.f32 %v850, %v858
    %v861 = vtanh.pop %v860
    %863 = vrot.lane.b32.xlu0 %v861, 64
    %v864 = vpop.permute.xlu0 %863
    %v866 = vmul.f32 %v845, %v864
    %867 = vst.msk [vmem:[#allocation2 + $0x8] sm:$0x30] %vm454, %v866
    %868 = vst.msk [vmem:[#allocation2 - $0x2] sm:$0x30] %vm456, %v866
    %v870 = vrot.slane %v866, 4
    %v872 = vadd.f32 %v767, %v870
    %v873 = vpack.c.bf16 %v866, %v866
    %v875 = vrot.slane %v873, 2
    %v877 = vsel %vm57, %v875, 0
    %879 = vmatpush.bf16.msra.mxu0 0
    %880 = vmatpush.bf16.msra.mxu0 0
    %881 = vmatpush.bf16.msra.mxu0 0
    %882 = vmatpush.bf16.msra.mxu0 0
    %883 = vmatpush.bf16.msra.mxu0 %v148
    %884 = vmatpush.bf16.msra.mxu0 %v146
    %885 = vmatpush.bf16.msra.mxu0 %v144
    %886 = vmatpush.bf16.msra.mxu0 %v142
    %887 = vmatmul.bf16.gmra.mxu0 %v877
    %v888 = vpop.f32.mrf.mxu0
    %v889 = vadd.f32 0.0, %v888
    %v890 = vpop.f32.mrf.mxu0
    %891 = vdwg.mxu0
    %892 = vmatpush.bf16.msra.mxu0 0
    %893 = vmatpush.bf16.msra.mxu0 0
    %894 = vmatpush.bf16.msra.mxu0 0
    %895 = vmatpush.bf16.msra.mxu0 0
    %896 = vmatpush.bf16.msra.mxu0 %v149
    %897 = vmatpush.bf16.msra.mxu0 %v147
    %898 = vmatpush.bf16.msra.mxu0 %v145
    %899 = vmatpush.bf16.msra.mxu0 %v143
    %900 = vmatmul.bf16.gmra.mxu0 %v877
    %v901 = vpop.f32.mrf.mxu0
    %v902 = vadd.f32 0.0, %v901
    %v903 = vpop.f32.mrf.mxu0
    %904 = vdwg.mxu0
    %v907 = vrot.slane %v889, 2
    %v908 = vrot.slane %v902, 2
    %v911 = vadd.f32 %v85, %v907
    %v912 = vadd.f32 %v108, %v908
    %v913 = vxor.u32 %v911, 2147483648
    %v914 = vxor.u32 %v912, 2147483648
    %v915 = vmul.f32 %v913, 1.442695
    %v916 = vpow.pop %v915
    %v917 = vmul.f32 %v914, 1.442695
    %v918 = vpow.pop %v917
    %v919 = vadd.f32 %v916, 1.0
    %v920 = vadd.f32 %v918, 1.0
    %v921 = vrcp.pop %v919
    %v922 = vmul.f32 %v919, %v921
    %v923 = vsub.f32 1.0, %v922
    %v924 = vmul.f32 %v921, %v923
    %v925 = vadd.f32 %v921, %v924
    %vm926 = vweird.f32 %v919
    %vm927 = vweird.f32 %v921
    %vm928 = vmor %vm926, %vm927
    %v929 = vsel %vm928, %v921, %v925
    %v930 = vand.u32 2147483647, %v919
    %vm931 = vcmp.eq.f32.partialorder %v930, 8.507059e+37
    %v932 = vand.u32 %v919, 2147483648
    %v933 = vor.u32 1.1754944e-38, %v932
    %v934 = vsel %vm931, %v933, %v929
    %v935 = vmul.f32 1.0, %v934
    %v936 = vrcp.pop %v920
    %v937 = vmul.f32 %v920, %v936
    %v938 = vsub.f32 1.0, %v937
    %v939 = vmul.f32 %v936, %v938
    %v940 = vadd.f32 %v936, %v939
    %vm941 = vweird.f32 %v920
    %vm942 = vweird.f32 %v936
    %vm943 = vmor %vm941, %vm942
    %v944 = vsel %vm943, %v936, %v940
    %v945 = vand.u32 2147483647, %v920
    %vm946 = vcmp.eq.f32.partialorder %v945, 8.507059e+37
    %v947 = vand.u32 %v920, 2147483648
    %v948 = vor.u32 1.1754944e-38, %v947
    %v949 = vsel %vm946, %v948, %v944
    %v950 = vmul.f32 1.0, %v949
    %v951 = vtanh.pop %v912
    %v953 = vrot.slane %v860, 6
    %v955 = vmul.f32 %v935, %v953
    %957 = vrot.lane.b32.xlu0 %v951, 64
    %v958 = vpop.permute.xlu0 %957
    %v960 = vmul.f32 %v935, %v958
    %962 = vrot.lane.b32.xlu0 %v960, 64
    %v963 = vpop.permute.xlu0 %962
    %v965 = vadd.f32 %v955, %v963
    %v966 = vtanh.pop %v965
    %968 = vrot.lane.b32.xlu0 %v966, 64
    %v969 = vpop.permute.xlu0 %968
    %v971 = vmul.f32 %v950, %v969
    %972 = vst.msk [vmem:[#allocation2 + $0x8] sm:$0xc0] %vm561, %v971
    %973 = vst.msk [vmem:[#allocation2 - $0x6] sm:$0xc0] %vm563, %v971
    %v975 = vrot.slane %v971, 6
    %v977 = vadd.f32 %v872, %v975
    %v978 = vld [vmem:[#allocation2] sm:$0xff]
    %v979 = vld [vmem:[#allocation2 + $0x8] sm:$0xff]
    %v980 = vld [vmem:[%s4] sm:$0xff]
    %v981 = vld [vmem:[%s4 + $0x8] sm:$0xff]
    %v982 = vld [vmem:[%s4 + $0x10] sm:$0xff]
    %v983 = vld [vmem:[%s4 + $0x18] sm:$0xff]
    %v984 = vld [vmem:[%s4 + $0x20] sm:$0xff]
    %v985 = vld [vmem:[%s4 + $0x28] sm:$0xff]
    %v986 = vld [vmem:[%s4 + $0x30] sm:$0xff]
    %v987 = vld [vmem:[%s4 + $0x38] sm:$0xff]
    %v988 = vld [vmem:[%s5] sm:$0x1]
    %v990 = vperm.slane %v988, 0
    %v993 = vsel %vm57, %v978, 0
    %v996 = vsel %vm57, %v979, 0
    %998 = vmatpush.msra.mxu0 0.0
    %999 = vmatpush.msra.mxu0 0.0
    %1000 = vmatpush.msra.mxu0 0.0
    %1001 = vmatpush.msra.mxu0 0.0
    %1002 = vmatpush.msra.mxu0 0.0
    %1003 = vmatpush.msra.mxu0 0.0
    %1004 = vmatpush.msra.mxu0 0.0
    %1005 = vmatpush.msra.mxu0 0.0
    %1006 = vmatpush.msra.mxu0 %v987
    %1007 = vmatpush.msra.mxu0 %v986
    %1008 = vmatpush.msra.mxu0 %v985
    %1009 = vmatpush.msra.mxu0 %v984
    %1010 = vmatpush.msra.mxu0 %v983
    %1011 = vmatpush.msra.mxu0 %v982
    %1012 = vmatpush.msra.mxu0 %v981
    %1013 = vmatpush.msra.mxu0 %v980
    %1014 = vmatmul.f32.gmra.mxu0 %v993
    %v1015 = vpop.f32.mrf.mxu0
    %v1016 = vadd.f32 %v990, %v1015
    %1017 = vmatmul.f32.gmra.mxu0 %v996
    %v1018 = vpop.f32.mrf.mxu0
    %v1019 = vadd.f32 %v990, %v1018
    %1020 = vdwg.mxu0
    %1021 = vst [vmem:[%s8] sm:$0xff] %v1016
    %1022 = vst [vmem:[%s8 + $0x8] sm:$0xff] %v1019
    %v1023 = vmul.f32 %v977, 0.125
    %v1024 = vld [vmem:[%s6] sm:$0xff]
    %v1025 = vld [vmem:[%s6 + $0x8] sm:$0xff]
    %v1026 = vld [vmem:[%s6 + $0x10] sm:$0xff]
    %v1027 = vld [vmem:[%s6 + $0x18] sm:$0xff]
    %v1028 = vld [vmem:[%s6 + $0x20] sm:$0xff]
    %v1029 = vld [vmem:[%s6 + $0x28] sm:$0xff]
    %v1030 = vld [vmem:[%s6 + $0x30] sm:$0xff]
    %v1031 = vld [vmem:[%s6 + $0x38] sm:$0xff]
    %v1032 = vld [vmem:[%s7] sm:$0x1]
    %v1034 = vperm.slane %v1032, 0
    %v1037 = vsel %vm57, %v1023, 0
    %1039 = vmatpush.msra.mxu0 0.0
    %1040 = vmatpush.msra.mxu0 0.0
    %1041 = vmatpush.msra.mxu0 0.0
    %1042 = vmatpush.msra.mxu0 0.0
    %1043 = vmatpush.msra.mxu0 0.0
    %1044 = vmatpush.msra.mxu0 0.0
    %1045 = vmatpush.msra.mxu0 0.0
    %1046 = vmatpush.msra.mxu0 0.0
    %1047 = vmatpush.msra.mxu0 %v1031
    %1048 = vmatpush.msra.mxu0 %v1030
    %1049 = vmatpush.msra.mxu0 %v1029
    %1050 = vmatpush.msra.mxu0 %v1028
    %1051 = vmatpush.msra.mxu0 %v1027
    %1052 = vmatpush.msra.mxu0 %v1026
    %1053 = vmatpush.msra.mxu0 %v1025
    %1054 = vmatpush.msra.mxu0 %v1024
    %1055 = vmatmul.f32.gmra.mxu0 %v1037
    %v1056 = vpop.f32.mrf.mxu0
    %v1057 = vadd.f32 %v1034, %v1056
    %1058 = vdwg.mxu0
    %1059 = vst [vmem:[#allocation3] sm:$0x3] %v1057
    // Predicated region
    $region34: #{model_forward.1} parent=1 // pred_check
      _
    $region35: #{model_forward.1} parent=1 // pred_check_branch
      %1061 = sbr.rel (0) target = $region37
    $region36: #{model_forward.1} parent=1 // pred_region
      _
    $region37: #{model_forward.1} parent=1 // pred_fallthru
      _
    // Predicated region
    $region38: #{model_forward.1} parent=1 // pred_check
      _
    $region39: #{model_forward.1} parent=1 // pred_check_branch
      %1063 = sbr.rel (0) target = $region41
    $region40: #{model_forward.1} parent=1 // pred_region
      %1065 = vsyncadd [#allocation4], 0
      %s1067 = sshll.u32 [#allocation3], 4
      %s1068 = int_to_ptr.vmem [resolvable:$true] %s1067
      %s1069 = sshll.u32 %s9, 4
      %s1070 = int_to_ptr.hbm [resolvable:$true] %s1069
      %1072 = dma.vmem_to_hbm [thread:$0]  %s1068, 32, %s1070, [#allocation4]
    $region41: #{model_forward.1} parent=1 // pred_fallthru
      _
    // Predicated region
    $region42: #{model_forward.1} parent=1 // pred_check
      _
    $region43: #{model_forward.1} parent=1 // pred_check_branch
      %1074 = sbr.rel (0) target = $region45
    $region44: #{model_forward.1} parent=1 // pred_region
      _
    $region45: #{model_forward.1} parent=1 // pred_fallthru
      _
    // Predicated region
    $region46: #{model_forward.1} parent=1 // pred_check
      _
    $region47: #{model_forward.1} parent=1 // pred_check_branch
      %1076 = sbr.rel (0) target = $region49
    $region48: #{model_forward.1} parent=1 // pred_region
      %1078 = dma.done [#allocation4], 32
    $region49: #{model_forward.1} parent=1 // pred_fallthru
      _
    %1079 = vsyncpa [#allocation4], 1

</llo_original>
